<compile_context>
chip_gen: v6e
topology: v6e:2x2x1
jax: 0.10.0
libtpu: 0.0.40
codegen_flags: <defaults>
</compile_context>

<pallas_src>
import functools
import math

import jax
import jax.numpy as jnp
from jax import lax
from jax.experimental import pallas as pl
from jax.experimental.pallas import tpu as pltpu

# ---- config (matches ModelConfig defaults) ----
NUM_FILTERS = 10                    # cfg.num_filters
HIDDEN = 10                         # cfg.encoder_embedding_dim
WIN = 400                           # window_length
HOP = 400                           # hop_length (== WIN -> non-overlapping frames)
OUT_DIM = 40                        # nn.Linear(encoder_embedding_dim, 40)

LANES = 128                         # lane-dense padding width
GATES_W = 4 * LANES                 # gate g lives in lanes [g*128, g*128 + HIDDEN)
INV_LN10 = 1.0 / math.log(10.0)


# ---------------------------------------------------------------------------
# Fused kernel: STFT log-power -> hoisted input projection -> LSTM -> Linear
# ---------------------------------------------------------------------------
def fused_kernel(frames_ref, basis_ref, wih_ref, whh_ref, gbias_ref,
                 wlin_ref, blin_ref, o_ref, *, batch, steps):
    # ---- STFT power spectrum + log10 (single MXU matmul, 256-lane output) ----
    # K = WIN = 400 is left unpadded on purpose: padding frames to 512 would add ~28%
    # HBM traffic on the largest input; the MXU handles the ragged K tile internally.
    frames = frames_ref[...]                                          # (B*T, WIN) f32
    proj = jnp.dot(frames, basis_ref[...],
                   preferred_element_type=jnp.float32)                # (B*T, 256)
    re = proj[:, :LANES]                                              # vreg-aligned halves
    im = proj[:, LANES:]
    power = re * re + im * im                                         # pad lanes == 0
    feats = jnp.log(power + 1e-9) * INV_LN10                          # log10; pad lanes = -9
    # (padding lanes of feats hit zero rows of wih below -> no contamination)

    # ---- hoisted input projection + bias: one dense matmul for all timesteps ----
    gates_x = (jnp.dot(feats, wih_ref[...],
                       preferred_element_type=jnp.float32)
               + gbias_ref[...])                                      # (B*T, 512)
    gates_x = gates_x.reshape(batch, steps, GATES_W)                  # rows are batch-major

    whh = whh_ref[...]                                                # (128, 512)

    # ---- LSTM recurrence: h/c live in vregs, loop fully unrolled (static T) ----
    h = jnp.zeros((batch, LANES), jnp.float32)
    c = jnp.zeros((batch, LANES), jnp.float32)
    for t in range(steps):
        gates = gates_x[:, t, :] + jnp.dot(
            h, whh, preferred_element_type=jnp.float32)               # (B, 512)
        i_g = jax.nn.sigmoid(gates[:, 0 * LANES:1 * LANES])           # aligned 128-lane
        f_g = jax.nn.sigmoid(gates[:, 1 * LANES:2 * LANES])           # gate groups
        g_g = jnp.tanh(gates[:, 2 * LANES:3 * LANES])
        o_g = jax.nn.sigmoid(gates[:, 3 * LANES:4 * LANES])
        c = f_g * c + i_g * g_g
        h = o_g * jnp.tanh(c)
        # padding lanes: gates_pad = 0 -> i=f=o=0.5, g=0 -> c_pad, h_pad stay exactly 0

    # ---- final Linear on the last hidden state (lane-dense padded output) ----
    o_ref[...] = (jnp.dot(h, wlin_ref[...], preferred_element_type=jnp.float32)
                  + blin_ref[...])                                    # (B, 128)


# ---------------------------------------------------------------------------
# Glue: DFT basis, parameter init + padded packing, end-to-end forward
# ---------------------------------------------------------------------------
def make_dft_basis():
    n = jnp.arange(WIN, dtype=jnp.float32)
    window = 0.5 * (1.0 - jnp.cos(2.0 * math.pi * n / WIN))           # periodic Hann
    k = jnp.arange(NUM_FILTERS, dtype=jnp.float32)
    ang = 2.0 * math.pi * n[:, None] * k[None, :] / float(WIN)        # (WIN, F)
    cos_b = (window[:, None] * jnp.cos(ang)).astype(jnp.float32)
    sin_b = (-window[:, None] * jnp.sin(ang)).astype(jnp.float32)
    basis = jnp.zeros((WIN, 2 * LANES), jnp.float32)
    basis = basis.at[:, :NUM_FILTERS].set(cos_b)
    basis = basis.at[:, LANES:LANES + NUM_FILTERS].set(sin_b)
    return basis, cos_b, sin_b


def init_params(key):
    k1, k2, k3, k4, k5, k6 = jax.random.split(key, 6)
    bound = 1.0 / math.sqrt(HIDDEN)
    w_ih = jax.random.uniform(k1, (4 * HIDDEN, NUM_FILTERS), jnp.float32, -bound, bound)
    w_hh = jax.random.uniform(k2, (4 * HIDDEN, HIDDEN), jnp.float32, -bound, bound)
    b_ih = jax.random.uniform(k3, (4 * HIDDEN,), jnp.float32, -bound, bound)
    b_hh = jax.random.uniform(k4, (4 * HIDDEN,), jnp.float32, -bound, bound)
    w_lin = jax.random.uniform(k5, (OUT_DIM, HIDDEN), jnp.float32, -bound, bound)
    b_lin = jax.random.uniform(k6, (OUT_DIM,), jnp.float32, -bound, bound)
    return dict(w_ih=w_ih, w_hh=w_hh, b=b_ih + b_hh, w_lin=w_lin, b_lin=b_lin)


def pack_params(p):
    """Pack nn.LSTM / nn.Linear weights into lane-dense, gate-major padded layouts."""
    wih_p = jnp.zeros((LANES, GATES_W), jnp.float32)
    whh_p = jnp.zeros((LANES, GATES_W), jnp.float32)
    gbias = jnp.zeros((1, GATES_W), jnp.float32)
    for g in range(4):                                               # i, f, g, o
        rows = slice(g * HIDDEN, (g + 1) * HIDDEN)
        cols = slice(g * LANES, g * LANES + HIDDEN)
        wih_p = wih_p.at[:NUM_FILTERS, cols].set(p["w_ih"][rows, :].T)
        whh_p = whh_p.at[:HIDDEN, cols].set(p["w_hh"][rows, :].T)
        gbias = gbias.at[0, cols].set(p["b"][rows])
    wlin_p = jnp.zeros((LANES, LANES), jnp.float32).at[:HIDDEN, :OUT_DIM].set(p["w_lin"].T)
    blin_p = jnp.zeros((1, LANES), jnp.float32).at[0, :OUT_DIM].set(p["b_lin"])
    return wih_p, whh_p, gbias, wlin_p, blin_p


def model_forward(x, packed, basis):
    wih_p, whh_p, gbias, wlin_p, blin_p = packed
    B, L = x.shape
    T = L // HOP
    # hop == win -> framing is a pure (view) reshape; rows are batch-major (b*T + t)
    frames_2d = x[:, :T * HOP].reshape(B * T, WIN)
    out_pad = pl.pallas_call(
        functools.partial(fused_kernel, batch=B, steps=T),
        out_shape=jax.ShapeDtypeStruct((B, LANES), jnp.float32),
        in_specs=[pl.BlockSpec(memory_space=pltpu.MemorySpace.VMEM)] * 7,
        out_specs=pl.BlockSpec(memory_space=pltpu.MemorySpace.VMEM),
    )(frames_2d, basis, wih_p, whh_p, gbias, wlin_p, blin_p)
    return out_pad[:, :OUT_DIM]                                      # (B, 40)


# ---------------------------------------------------------------------------
# Pure-JAX reference (same math, unpadded) for a correctness guard
# ---------------------------------------------------------------------------
def reference_forward(x, p, cos_b, sin_b):
    hp = lax.Precision.HIGHEST
    B, L = x.shape
    T = L // HOP
    frames = x[:, :T * HOP].reshape(B, T, WIN)
    re = jnp.einsum("btw,wf->btf", frames, cos_b, precision=hp)
    im = jnp.einsum("btw,wf->btf", frames, sin_b, precision=hp)
    feats = jnp.log10(re * re + im * im + 1e-9)                      # (B, T, F)

    def step(carry, x_t):
        h, c = carry
        gates = (jnp.dot(x_t, p["w_ih"].T, precision=hp)
                 + jnp.dot(h, p["w_hh"].T, precision=hp) + p["b"])
        i = jax.nn.sigmoid(gates[:, :HIDDEN])
        f = jax.nn.sigmoid(gates[:, HIDDEN:2 * HIDDEN])
        g = jnp.tanh(gates[:, 2 * HIDDEN:3 * HIDDEN])
        o = jax.nn.sigmoid(gates[:, 3 * HIDDEN:])
        c = f * c + i * g
        h = o * jnp.tanh(c)
        return (h, c), None

    h0 = jnp.zeros((B, HIDDEN), jnp.float32)
    (h, _), _ = lax.scan(step, (h0, h0), jnp.transpose(feats, (1, 0, 2)))
    return jnp.dot(h, p["w_lin"].T, precision=hp) + p["b_lin"]


if __name__ == "__main__":
    key = jax.random.PRNGKey(0)
    k_sig, k_par = jax.random.split(key)

    B, T = 2, 8
    L = T * HOP                                                      # 3200 samples
    x = jax.random.normal(k_sig, (B, L), dtype=jnp.float32)

    raw_params = init_params(k_par)
    packed = pack_params(raw_params)
    basis, cos_b, sin_b = make_dft_basis()

    forward = jax.jit(model_forward)
    out = forward(x, packed, basis)
    out = jax.block_until_ready(out)
    assert out.shape == (B, OUT_DIM) and out.dtype == jnp.float32

    ref = reference_forward(x, raw_params, cos_b, sin_b)
    max_err = float(jnp.max(jnp.abs(out - ref)))
    assert max_err < 5e-2, f"mismatch vs pure-JAX reference: {max_err}"

    print("KERNEL_OK")
</pallas_src>

<mosaic_0001>
module attributes {stable_mosaic.version = 11 : i64} {
  func.func @fused_kernel(%arg0: memref<16x400xf32, #tpu.memory_space<vmem>>, %arg1: memref<400x256xf32, #tpu.memory_space<vmem>>, %arg2: memref<128x512xf32, #tpu.memory_space<vmem>>, %arg3: memref<128x512xf32, #tpu.memory_space<vmem>>, %arg4: memref<1x512xf32, #tpu.memory_space<vmem>>, %arg5: memref<128x128xf32, #tpu.memory_space<vmem>>, %arg6: memref<1x128xf32, #tpu.memory_space<vmem>>, %arg7: memref<2x128xf32, #tpu.memory_space<vmem>>) attributes {dimension_semantics = [], scalar_prefetch = 0 : i64, scratch_operands = 0 : i64, tpu.core_type = #tpu.core_type<tc>} {
    %c0 = arith.constant 0 : index
    %c0_0 = arith.constant 0 : index
    %0 = vector.load %arg0[%c0, %c0_0] : memref<16x400xf32, #tpu.memory_space<vmem>>, vector<16x400xf32>
    %c0_1 = arith.constant 0 : index
    %c0_2 = arith.constant 0 : index
    %1 = vector.load %arg1[%c0_1, %c0_2] : memref<400x256xf32, #tpu.memory_space<vmem>>, vector<400x256xf32>
    %cst = arith.constant dense<0.000000e+00> : vector<16x256xf32>
    %2 = tpu.matmul %0, %1, %cst {dimension_numbers = #tpu.dot_dimension_numbers<[1], [0], [0], [1], [0, 0, 1, 1], [], []>} : vector<16x400xf32>, vector<400x256xf32>, vector<16x256xf32> -> vector<16x256xf32>
    %3 = vector.extract_strided_slice %2 {offsets = [0, 0], sizes = [16, 128], strides = [1, 1]} : vector<16x256xf32> to vector<16x128xf32>
    %4 = vector.extract_strided_slice %2 {offsets = [0, 128], sizes = [16, 128], strides = [1, 1]} : vector<16x256xf32> to vector<16x128xf32>
    %5 = arith.mulf %3, %3 : vector<16x128xf32>
    %6 = arith.mulf %4, %4 : vector<16x128xf32>
    %7 = arith.addf %5, %6 : vector<16x128xf32>
    %cst_3 = arith.constant 9.99999971E-10 : f32
    %8 = vector.broadcast %cst_3 : f32 to vector<16x128xf32>
    %9 = arith.addf %7, %8 : vector<16x128xf32>
    %10 = math.log %9 : vector<16x128xf32>
    %cst_4 = arith.constant 0.434294492 : f32
    %11 = vector.broadcast %cst_4 : f32 to vector<16x128xf32>
    %12 = arith.mulf %10, %11 : vector<16x128xf32>
    %c0_5 = arith.constant 0 : index
    %c0_6 = arith.constant 0 : index
    %13 = vector.load %arg2[%c0_5, %c0_6] : memref<128x512xf32, #tpu.memory_space<vmem>>, vector<128x512xf32>
    %cst_7 = arith.constant dense<0.000000e+00> : vector<16x512xf32>
    %14 = tpu.matmul %12, %13, %cst_7 {dimension_numbers = #tpu.dot_dimension_numbers<[1], [0], [0], [1], [0, 0, 1, 1], [], []>} : vector<16x128xf32>, vector<128x512xf32>, vector<16x512xf32> -> vector<16x512xf32>
    %c0_8 = arith.constant 0 : index
    %c0_9 = arith.constant 0 : index
    %15 = vector.load %arg4[%c0_8, %c0_9] : memref<1x512xf32, #tpu.memory_space<vmem>>, vector<1x512xf32>
    %16 = vector.broadcast %15 : vector<1x512xf32> to vector<16x512xf32>
    %17 = arith.addf %14, %16 : vector<16x512xf32>
    %18 = vector.shape_cast %17 : vector<16x512xf32> to vector<2x8x512xf32>
    %c0_10 = arith.constant 0 : index
    %c0_11 = arith.constant 0 : index
    %19 = vector.load %arg3[%c0_10, %c0_11] : memref<128x512xf32, #tpu.memory_space<vmem>>, vector<128x512xf32>
    %cst_12 = arith.constant 0.000000e+00 : f32
    %20 = vector.broadcast %cst_12 : f32 to vector<2x128xf32>
    %cst_13 = arith.constant 0.000000e+00 : f32
    %21 = vector.broadcast %cst_13 : f32 to vector<2x128xf32>
    %22 = vector.extract_strided_slice %18 {offsets = [0, 0, 0], sizes = [2, 1, 512], strides = [1, 1, 1]} : vector<2x8x512xf32> to vector<2x1x512xf32>
    %23 = vector.shape_cast %22 : vector<2x1x512xf32> to vector<2x512xf32>
    %cst_14 = arith.constant dense<0.000000e+00> : vector<2x512xf32>
    %24 = tpu.matmul %20, %19, %cst_14 {dimension_numbers = #tpu.dot_dimension_numbers<[1], [0], [0], [1], [0, 0, 1, 1], [], []>} : vector<2x128xf32>, vector<128x512xf32>, vector<2x512xf32> -> vector<2x512xf32>
    %25 = arith.addf %23, %24 : vector<2x512xf32>
    %26 = vector.extract_strided_slice %25 {offsets = [0, 0], sizes = [2, 128], strides = [1, 1]} : vector<2x512xf32> to vector<2x128xf32>
    %27 = arith.negf %26 : vector<2x128xf32>
    %28 = math.exp %27 : vector<2x128xf32>
    %cst_15 = arith.constant 1.000000e+00 : f32
    %29 = vector.broadcast %cst_15 : f32 to vector<2x128xf32>
    %30 = arith.addf %29, %28 : vector<2x128xf32>
    %31 = arith.divf %29, %30 : vector<2x128xf32>
    %32 = vector.extract_strided_slice %25 {offsets = [0, 128], sizes = [2, 128], strides = [1, 1]} : vector<2x512xf32> to vector<2x128xf32>
    %33 = arith.negf %32 : vector<2x128xf32>
    %34 = math.exp %33 : vector<2x128xf32>
    %cst_16 = arith.constant 1.000000e+00 : f32
    %35 = vector.broadcast %cst_16 : f32 to vector<2x128xf32>
    %36 = arith.addf %35, %34 : vector<2x128xf32>
    %37 = arith.divf %35, %36 : vector<2x128xf32>
    %38 = vector.extract_strided_slice %25 {offsets = [0, 256], sizes = [2, 128], strides = [1, 1]} : vector<2x512xf32> to vector<2x128xf32>
    %39 = math.tanh %38 : vector<2x128xf32>
    %40 = vector.extract_strided_slice %25 {offsets = [0, 384], sizes = [2, 128], strides = [1, 1]} : vector<2x512xf32> to vector<2x128xf32>
    %41 = arith.negf %40 : vector<2x128xf32>
    %42 = math.exp %41 : vector<2x128xf32>
    %cst_17 = arith.constant 1.000000e+00 : f32
    %43 = vector.broadcast %cst_17 : f32 to vector<2x128xf32>
    %44 = arith.addf %43, %42 : vector<2x128xf32>
    %45 = arith.divf %43, %44 : vector<2x128xf32>
    %46 = arith.mulf %37, %21 : vector<2x128xf32>
    %47 = arith.mulf %31, %39 : vector<2x128xf32>
    %48 = arith.addf %46, %47 : vector<2x128xf32>
    %49 = math.tanh %48 : vector<2x128xf32>
    %50 = arith.mulf %45, %49 : vector<2x128xf32>
    %51 = vector.extract_strided_slice %18 {offsets = [0, 1, 0], sizes = [2, 1, 512], strides = [1, 1, 1]} : vector<2x8x512xf32> to vector<2x1x512xf32>
    %52 = vector.shape_cast %51 : vector<2x1x512xf32> to vector<2x512xf32>
    %cst_18 = arith.constant dense<0.000000e+00> : vector<2x512xf32>
    %53 = tpu.matmul %50, %19, %cst_18 {dimension_numbers = #tpu.dot_dimension_numbers<[1], [0], [0], [1], [0, 0, 1, 1], [], []>} : vector<2x128xf32>, vector<128x512xf32>, vector<2x512xf32> -> vector<2x512xf32>
    %54 = arith.addf %52, %53 : vector<2x512xf32>
    %55 = vector.extract_strided_slice %54 {offsets = [0, 0], sizes = [2, 128], strides = [1, 1]} : vector<2x512xf32> to vector<2x128xf32>
    %56 = arith.negf %55 : vector<2x128xf32>
    %57 = math.exp %56 : vector<2x128xf32>
    %cst_19 = arith.constant 1.000000e+00 : f32
    %58 = vector.broadcast %cst_19 : f32 to vector<2x128xf32>
    %59 = arith.addf %58, %57 : vector<2x128xf32>
    %60 = arith.divf %58, %59 : vector<2x128xf32>
    %61 = vector.extract_strided_slice %54 {offsets = [0, 128], sizes = [2, 128], strides = [1, 1]} : vector<2x512xf32> to vector<2x128xf32>
    %62 = arith.negf %61 : vector<2x128xf32>
    %63 = math.exp %62 : vector<2x128xf32>
    %cst_20 = arith.constant 1.000000e+00 : f32
    %64 = vector.broadcast %cst_20 : f32 to vector<2x128xf32>
    %65 = arith.addf %64, %63 : vector<2x128xf32>
    %66 = arith.divf %64, %65 : vector<2x128xf32>
    %67 = vector.extract_strided_slice %54 {offsets = [0, 256], sizes = [2, 128], strides = [1, 1]} : vector<2x512xf32> to vector<2x128xf32>
    %68 = math.tanh %67 : vector<2x128xf32>
    %69 = vector.extract_strided_slice %54 {offsets = [0, 384], sizes = [2, 128], strides = [1, 1]} : vector<2x512xf32> to vector<2x128xf32>
    %70 = arith.negf %69 : vector<2x128xf32>
    %71 = math.exp %70 : vector<2x128xf32>
    %cst_21 = arith.constant 1.000000e+00 : f32
    %72 = vector.broadcast %cst_21 : f32 to vector<2x128xf32>
    %73 = arith.addf %72, %71 : vector<2x128xf32>
    %74 = arith.divf %72, %73 : vector<2x128xf32>
    %75 = arith.mulf %66, %48 : vector<2x128xf32>
    %76 = arith.mulf %60, %68 : vector<2x128xf32>
    %77 = arith.addf %75, %76 : vector<2x128xf32>
    %78 = math.tanh %77 : vector<2x128xf32>
    %79 = arith.mulf %74, %78 : vector<2x128xf32>
    %80 = vector.extract_strided_slice %18 {offsets = [0, 2, 0], sizes = [2, 1, 512], strides = [1, 1, 1]} : vector<2x8x512xf32> to vector<2x1x512xf32>
    %81 = vector.shape_cast %80 : vector<2x1x512xf32> to vector<2x512xf32>
    %cst_22 = arith.constant dense<0.000000e+00> : vector<2x512xf32>
    %82 = tpu.matmul %79, %19, %cst_22 {dimension_numbers = #tpu.dot_dimension_numbers<[1], [0], [0], [1], [0, 0, 1, 1], [], []>} : vector<2x128xf32>, vector<128x512xf32>, vector<2x512xf32> -> vector<2x512xf32>
    %83 = arith.addf %81, %82 : vector<2x512xf32>
    %84 = vector.extract_strided_slice %83 {offsets = [0, 0], sizes = [2, 128], strides = [1, 1]} : vector<2x512xf32> to vector<2x128xf32>
    %85 = arith.negf %84 : vector<2x128xf32>
    %86 = math.exp %85 : vector<2x128xf32>
    %cst_23 = arith.constant 1.000000e+00 : f32
    %87 = vector.broadcast %cst_23 : f32 to vector<2x128xf32>
    %88 = arith.addf %87, %86 : vector<2x128xf32>
    %89 = arith.divf %87, %88 : vector<2x128xf32>
    %90 = vector.extract_strided_slice %83 {offsets = [0, 128], sizes = [2, 128], strides = [1, 1]} : vector<2x512xf32> to vector<2x128xf32>
    %91 = arith.negf %90 : vector<2x128xf32>
    %92 = math.exp %91 : vector<2x128xf32>
    %cst_24 = arith.constant 1.000000e+00 : f32
    %93 = vector.broadcast %cst_24 : f32 to vector<2x128xf32>
    %94 = arith.addf %93, %92 : vector<2x128xf32>
    %95 = arith.divf %93, %94 : vector<2x128xf32>
    %96 = vector.extract_strided_slice %83 {offsets = [0, 256], sizes = [2, 128], strides = [1, 1]} : vector<2x512xf32> to vector<2x128xf32>
    %97 = math.tanh %96 : vector<2x128xf32>
    %98 = vector.extract_strided_slice %83 {offsets = [0, 384], sizes = [2, 128], strides = [1, 1]} : vector<2x512xf32> to vector<2x128xf32>
    %99 = arith.negf %98 : vector<2x128xf32>
    %100 = math.exp %99 : vector<2x128xf32>
    %cst_25 = arith.constant 1.000000e+00 : f32
    %101 = vector.broadcast %cst_25 : f32 to vector<2x128xf32>
    %102 = arith.addf %101, %100 : vector<2x128xf32>
    %103 = arith.divf %101, %102 : vector<2x128xf32>
    %104 = arith.mulf %95, %77 : vector<2x128xf32>
    %105 = arith.mulf %89, %97 : vector<2x128xf32>
    %106 = arith.addf %104, %105 : vector<2x128xf32>
    %107 = math.tanh %106 : vector<2x128xf32>
    %108 = arith.mulf %103, %107 : vector<2x128xf32>
    %109 = vector.extract_strided_slice %18 {offsets = [0, 3, 0], sizes = [2, 1, 512], strides = [1, 1, 1]} : vector<2x8x512xf32> to vector<2x1x512xf32>
    %110 = vector.shape_cast %109 : vector<2x1x512xf32> to vector<2x512xf32>
    %cst_26 = arith.constant dense<0.000000e+00> : vector<2x512xf32>
    %111 = tpu.matmul %108, %19, %cst_26 {dimension_numbers = #tpu.dot_dimension_numbers<[1], [0], [0], [1], [0, 0, 1, 1], [], []>} : vector<2x128xf32>, vector<128x512xf32>, vector<2x512xf32> -> vector<2x512xf32>
    %112 = arith.addf %110, %111 : vector<2x512xf32>
    %113 = vector.extract_strided_slice %112 {offsets = [0, 0], sizes = [2, 128], strides = [1, 1]} : vector<2x512xf32> to vector<2x128xf32>
    %114 = arith.negf %113 : vector<2x128xf32>
    %115 = math.exp %114 : vector<2x128xf32>
    %cst_27 = arith.constant 1.000000e+00 : f32
    %116 = vector.broadcast %cst_27 : f32 to vector<2x128xf32>
    %117 = arith.addf %116, %115 : vector<2x128xf32>
    %118 = arith.divf %116, %117 : vector<2x128xf32>
    %119 = vector.extract_strided_slice %112 {offsets = [0, 128], sizes = [2, 128], strides = [1, 1]} : vector<2x512xf32> to vector<2x128xf32>
    %120 = arith.negf %119 : vector<2x128xf32>
    %121 = math.exp %120 : vector<2x128xf32>
    %cst_28 = arith.constant 1.000000e+00 : f32
    %122 = vector.broadcast %cst_28 : f32 to vector<2x128xf32>
    %123 = arith.addf %122, %121 : vector<2x128xf32>
    %124 = arith.divf %122, %123 : vector<2x128xf32>
    %125 = vector.extract_strided_slice %112 {offsets = [0, 256], sizes = [2, 128], strides = [1, 1]} : vector<2x512xf32> to vector<2x128xf32>
    %126 = math.tanh %125 : vector<2x128xf32>
    %127 = vector.extract_strided_slice %112 {offsets = [0, 384], sizes = [2, 128], strides = [1, 1]} : vector<2x512xf32> to vector<2x128xf32>
    %128 = arith.negf %127 : vector<2x128xf32>
    %129 = math.exp %128 : vector<2x128xf32>
    %cst_29 = arith.constant 1.000000e+00 : f32
    %130 = vector.broadcast %cst_29 : f32 to vector<2x128xf32>
    %131 = arith.addf %130, %129 : vector<2x128xf32>
    %132 = arith.divf %130, %131 : vector<2x128xf32>
    %133 = arith.mulf %124, %106 : vector<2x128xf32>
    %134 = arith.mulf %118, %126 : vector<2x128xf32>
    %135 = arith.addf %133, %134 : vector<2x128xf32>
    %136 = math.tanh %135 : vector<2x128xf32>
    %137 = arith.mulf %132, %136 : vector<2x128xf32>
    %138 = vector.extract_strided_slice %18 {offsets = [0, 4, 0], sizes = [2, 1, 512], strides = [1, 1, 1]} : vector<2x8x512xf32> to vector<2x1x512xf32>
    %139 = vector.shape_cast %138 : vector<2x1x512xf32> to vector<2x512xf32>
    %cst_30 = arith.constant dense<0.000000e+00> : vector<2x512xf32>
    %140 = tpu.matmul %137, %19, %cst_30 {dimension_numbers = #tpu.dot_dimension_numbers<[1], [0], [0], [1], [0, 0, 1, 1], [], []>} : vector<2x128xf32>, vector<128x512xf32>, vector<2x512xf32> -> vector<2x512xf32>
    %141 = arith.addf %139, %140 : vector<2x512xf32>
    %142 = vector.extract_strided_slice %141 {offsets = [0, 0], sizes = [2, 128], strides = [1, 1]} : vector<2x512xf32> to vector<2x128xf32>
    %143 = arith.negf %142 : vector<2x128xf32>
    %144 = math.exp %143 : vector<2x128xf32>
    %cst_31 = arith.constant 1.000000e+00 : f32
    %145 = vector.broadcast %cst_31 : f32 to vector<2x128xf32>
    %146 = arith.addf %145, %144 : vector<2x128xf32>
    %147 = arith.divf %145, %146 : vector<2x128xf32>
    %148 = vector.extract_strided_slice %141 {offsets = [0, 128], sizes = [2, 128], strides = [1, 1]} : vector<2x512xf32> to vector<2x128xf32>
    %149 = arith.negf %148 : vector<2x128xf32>
    %150 = math.exp %149 : vector<2x128xf32>
    %cst_32 = arith.constant 1.000000e+00 : f32
    %151 = vector.broadcast %cst_32 : f32 to vector<2x128xf32>
    %152 = arith.addf %151, %150 : vector<2x128xf32>
    %153 = arith.divf %151, %152 : vector<2x128xf32>
    %154 = vector.extract_strided_slice %141 {offsets = [0, 256], sizes = [2, 128], strides = [1, 1]} : vector<2x512xf32> to vector<2x128xf32>
    %155 = math.tanh %154 : vector<2x128xf32>
    %156 = vector.extract_strided_slice %141 {offsets = [0, 384], sizes = [2, 128], strides = [1, 1]} : vector<2x512xf32> to vector<2x128xf32>
    %157 = arith.negf %156 : vector<2x128xf32>
    %158 = math.exp %157 : vector<2x128xf32>
    %cst_33 = arith.constant 1.000000e+00 : f32
    %159 = vector.broadcast %cst_33 : f32 to vector<2x128xf32>
    %160 = arith.addf %159, %158 : vector<2x128xf32>
    %161 = arith.divf %159, %160 : vector<2x128xf32>
    %162 = arith.mulf %153, %135 : vector<2x128xf32>
    %163 = arith.mulf %147, %155 : vector<2x128xf32>
    %164 = arith.addf %162, %163 : vector<2x128xf32>
    %165 = math.tanh %164 : vector<2x128xf32>
    %166 = arith.mulf %161, %165 : vector<2x128xf32>
    %167 = vector.extract_strided_slice %18 {offsets = [0, 5, 0], sizes = [2, 1, 512], strides = [1, 1, 1]} : vector<2x8x512xf32> to vector<2x1x512xf32>
    %168 = vector.shape_cast %167 : vector<2x1x512xf32> to vector<2x512xf32>
    %cst_34 = arith.constant dense<0.000000e+00> : vector<2x512xf32>
    %169 = tpu.matmul %166, %19, %cst_34 {dimension_numbers = #tpu.dot_dimension_numbers<[1], [0], [0], [1], [0, 0, 1, 1], [], []>} : vector<2x128xf32>, vector<128x512xf32>, vector<2x512xf32> -> vector<2x512xf32>
    %170 = arith.addf %168, %169 : vector<2x512xf32>
    %171 = vector.extract_strided_slice %170 {offsets = [0, 0], sizes = [2, 128], strides = [1, 1]} : vector<2x512xf32> to vector<2x128xf32>
    %172 = arith.negf %171 : vector<2x128xf32>
    %173 = math.exp %172 : vector<2x128xf32>
    %cst_35 = arith.constant 1.000000e+00 : f32
    %174 = vector.broadcast %cst_35 : f32 to vector<2x128xf32>
    %175 = arith.addf %174, %173 : vector<2x128xf32>
    %176 = arith.divf %174, %175 : vector<2x128xf32>
    %177 = vector.extract_strided_slice %170 {offsets = [0, 128], sizes = [2, 128], strides = [1, 1]} : vector<2x512xf32> to vector<2x128xf32>
    %178 = arith.negf %177 : vector<2x128xf32>
    %179 = math.exp %178 : vector<2x128xf32>
    %cst_36 = arith.constant 1.000000e+00 : f32
    %180 = vector.broadcast %cst_36 : f32 to vector<2x128xf32>
    %181 = arith.addf %180, %179 : vector<2x128xf32>
    %182 = arith.divf %180, %181 : vector<2x128xf32>
    %183 = vector.extract_strided_slice %170 {offsets = [0, 256], sizes = [2, 128], strides = [1, 1]} : vector<2x512xf32> to vector<2x128xf32>
    %184 = math.tanh %183 : vector<2x128xf32>
    %185 = vector.extract_strided_slice %170 {offsets = [0, 384], sizes = [2, 128], strides = [1, 1]} : vector<2x512xf32> to vector<2x128xf32>
    %186 = arith.negf %185 : vector<2x128xf32>
    %187 = math.exp %186 : vector<2x128xf32>
    %cst_37 = arith.constant 1.000000e+00 : f32
    %188 = vector.broadcast %cst_37 : f32 to vector<2x128xf32>
    %189 = arith.addf %188, %187 : vector<2x128xf32>
    %190 = arith.divf %188, %189 : vector<2x128xf32>
    %191 = arith.mulf %182, %164 : vector<2x128xf32>
    %192 = arith.mulf %176, %184 : vector<2x128xf32>
    %193 = arith.addf %191, %192 : vector<2x128xf32>
    %194 = math.tanh %193 : vector<2x128xf32>
    %195 = arith.mulf %190, %194 : vector<2x128xf32>
    %196 = vector.extract_strided_slice %18 {offsets = [0, 6, 0], sizes = [2, 1, 512], strides = [1, 1, 1]} : vector<2x8x512xf32> to vector<2x1x512xf32>
    %197 = vector.shape_cast %196 : vector<2x1x512xf32> to vector<2x512xf32>
    %cst_38 = arith.constant dense<0.000000e+00> : vector<2x512xf32>
    %198 = tpu.matmul %195, %19, %cst_38 {dimension_numbers = #tpu.dot_dimension_numbers<[1], [0], [0], [1], [0, 0, 1, 1], [], []>} : vector<2x128xf32>, vector<128x512xf32>, vector<2x512xf32> -> vector<2x512xf32>
    %199 = arith.addf %197, %198 : vector<2x512xf32>
    %200 = vector.extract_strided_slice %199 {offsets = [0, 0], sizes = [2, 128], strides = [1, 1]} : vector<2x512xf32> to vector<2x128xf32>
    %201 = arith.negf %200 : vector<2x128xf32>
    %202 = math.exp %201 : vector<2x128xf32>
    %cst_39 = arith.constant 1.000000e+00 : f32
    %203 = vector.broadcast %cst_39 : f32 to vector<2x128xf32>
    %204 = arith.addf %203, %202 : vector<2x128xf32>
    %205 = arith.divf %203, %204 : vector<2x128xf32>
    %206 = vector.extract_strided_slice %199 {offsets = [0, 128], sizes = [2, 128], strides = [1, 1]} : vector<2x512xf32> to vector<2x128xf32>
    %207 = arith.negf %206 : vector<2x128xf32>
    %208 = math.exp %207 : vector<2x128xf32>
    %cst_40 = arith.constant 1.000000e+00 : f32
    %209 = vector.broadcast %cst_40 : f32 to vector<2x128xf32>
    %210 = arith.addf %209, %208 : vector<2x128xf32>
    %211 = arith.divf %209, %210 : vector<2x128xf32>
    %212 = vector.extract_strided_slice %199 {offsets = [0, 256], sizes = [2, 128], strides = [1, 1]} : vector<2x512xf32> to vector<2x128xf32>
    %213 = math.tanh %212 : vector<2x128xf32>
    %214 = vector.extract_strided_slice %199 {offsets = [0, 384], sizes = [2, 128], strides = [1, 1]} : vector<2x512xf32> to vector<2x128xf32>
    %215 = arith.negf %214 : vector<2x128xf32>
    %216 = math.exp %215 : vector<2x128xf32>
    %cst_41 = arith.constant 1.000000e+00 : f32
    %217 = vector.broadcast %cst_41 : f32 to vector<2x128xf32>
    %218 = arith.addf %217, %216 : vector<2x128xf32>
    %219 = arith.divf %217, %218 : vector<2x128xf32>
    %220 = arith.mulf %211, %193 : vector<2x128xf32>
    %221 = arith.mulf %205, %213 : vector<2x128xf32>
    %222 = arith.addf %220, %221 : vector<2x128xf32>
    %223 = math.tanh %222 : vector<2x128xf32>
    %224 = arith.mulf %219, %223 : vector<2x128xf32>
    %225 = vector.extract_strided_slice %18 {offsets = [0, 7, 0], sizes = [2, 1, 512], strides = [1, 1, 1]} : vector<2x8x512xf32> to vector<2x1x512xf32>
    %226 = vector.shape_cast %225 : vector<2x1x512xf32> to vector<2x512xf32>
    %cst_42 = arith.constant dense<0.000000e+00> : vector<2x512xf32>
    %227 = tpu.matmul %224, %19, %cst_42 {dimension_numbers = #tpu.dot_dimension_numbers<[1], [0], [0], [1], [0, 0, 1, 1], [], []>} : vector<2x128xf32>, vector<128x512xf32>, vector<2x512xf32> -> vector<2x512xf32>
    %228 = arith.addf %226, %227 : vector<2x512xf32>
    %229 = vector.extract_strided_slice %228 {offsets = [0, 0], sizes = [2, 128], strides = [1, 1]} : vector<2x512xf32> to vector<2x128xf32>
    %230 = arith.negf %229 : vector<2x128xf32>
    %231 = math.exp %230 : vector<2x128xf32>
    %cst_43 = arith.constant 1.000000e+00 : f32
    %232 = vector.broadcast %cst_43 : f32 to vector<2x128xf32>
    %233 = arith.addf %232, %231 : vector<2x128xf32>
    %234 = arith.divf %232, %233 : vector<2x128xf32>
    %235 = vector.extract_strided_slice %228 {offsets = [0, 128], sizes = [2, 128], strides = [1, 1]} : vector<2x512xf32> to vector<2x128xf32>
    %236 = arith.negf %235 : vector<2x128xf32>
    %237 = math.exp %236 : vector<2x128xf32>
    %cst_44 = arith.constant 1.000000e+00 : f32
    %238 = vector.broadcast %cst_44 : f32 to vector<2x128xf32>
    %239 = arith.addf %238, %237 : vector<2x128xf32>
    %240 = arith.divf %238, %239 : vector<2x128xf32>
    %241 = vector.extract_strided_slice %228 {offsets = [0, 256], sizes = [2, 128], strides = [1, 1]} : vector<2x512xf32> to vector<2x128xf32>
    %242 = math.tanh %241 : vector<2x128xf32>
    %243 = vector.extract_strided_slice %228 {offsets = [0, 384], sizes = [2, 128], strides = [1, 1]} : vector<2x512xf32> to vector<2x128xf32>
    %244 = arith.negf %243 : vector<2x128xf32>
    %245 = math.exp %244 : vector<2x128xf32>
    %cst_45 = arith.constant 1.000000e+00 : f32
    %246 = vector.broadcast %cst_45 : f32 to vector<2x128xf32>
    %247 = arith.addf %246, %245 : vector<2x128xf32>
    %248 = arith.divf %246, %247 : vector<2x128xf32>
    %249 = arith.mulf %240, %222 : vector<2x128xf32>
    %250 = arith.mulf %234, %242 : vector<2x128xf32>
    %251 = arith.addf %249, %250 : vector<2x128xf32>
    %252 = math.tanh %251 : vector<2x128xf32>
    %253 = arith.mulf %248, %252 : vector<2x128xf32>
    %c0_46 = arith.constant 0 : index
    %c0_47 = arith.constant 0 : index
    %254 = vector.load %arg5[%c0_46, %c0_47] : memref<128x128xf32, #tpu.memory_space<vmem>>, vector<128x128xf32>
    %cst_48 = arith.constant dense<0.000000e+00> : vector<2x128xf32>
    %255 = tpu.matmul %253, %254, %cst_48 {dimension_numbers = #tpu.dot_dimension_numbers<[1], [0], [0], [1], [0, 0, 1, 1], [], []>} : vector<2x128xf32>, vector<128x128xf32>, vector<2x128xf32> -> vector<2x128xf32>
    %c0_49 = arith.constant 0 : index
    %c0_50 = arith.constant 0 : index
    %256 = vector.load %arg6[%c0_49, %c0_50] : memref<1x128xf32, #tpu.memory_space<vmem>>, vector<1x128xf32>
    %257 = vector.broadcast %256 : vector<1x128xf32> to vector<2x128xf32>
    %258 = arith.addf %255, %257 : vector<2x128xf32>
    %c0_51 = arith.constant 0 : index
    %c0_52 = arith.constant 0 : index
    %259 = vector.load %arg7[%c0_51, %c0_52] : memref<2x128xf32, #tpu.memory_space<vmem>>, vector<2x128xf32>
    tpu.vector_store %arg7[%c0_51, %c0_52], %258 {strides = array<i32>} : memref<2x128xf32, #tpu.memory_space<vmem>>, vector<2x128xf32>,
    return
  }
}

</mosaic_0001>

<llo_original>
// kernel: model_forward.1
$region0: #{model_forward.1}
  #allocation0 [shape = 'u32[]', space=smem, size = 0x4, offset = 0x4, fixed_abs, tag = 'smem constant byte address 0x4 - core index']
  #allocation1 [shape = 'u32[144,128]{1,0:T(1,128)}', space=vmem, size = 0x12000, scoped, tag = 'internal scratch']
  %s0 = inlined_call_operand.vmem [shape: f32[16,400], index: 0, kind: input, shape index: {}]
  %s1 = inlined_call_operand.hbm [shape: f32[400,256], index: 1, kind: input, shape index: {}]
  %s2 = inlined_call_operand.hbm [shape: f32[128,512], index: 2, kind: input, shape index: {}]
  %s3 = inlined_call_operand.hbm [shape: f32[128,512], index: 3, kind: input, shape index: {}]
  %s4 = inlined_call_operand.vmem [shape: f32[1,512], index: 4, kind: input, shape index: {}]
  %s5 = inlined_call_operand.hbm [shape: f32[128,128], index: 5, kind: input, shape index: {}]
  %s6 = inlined_call_operand.vmem [shape: f32[1,128], index: 6, kind: input, shape index: {}]
  %s7 = inlined_call_operand.hbm [shape: f32[2,128], index: 7, kind: output, shape index: {}]
  %s8 = sld [smem:[#allocation0]]
  $region54: #{model_forward.1} parent=0
    _
  %s10 = ssub.s32 1, %s8
  %s11 = scalar_select 0, %s10, %s8
  $region1: #{model_forward.1} parent=0
    #allocation2 [shape = 'u8[409600]{0}', space=vmem, size = 0x64000, scoped, tag = 'input window, operand 1, single buffered']
    #allocation3 [shape = 's32[1]{0}', space=sflag, size = 0x4, scoped, tag = 'scoped memory for model_forward.1']
    #allocation4 [shape = 's32[1]{0}', space=sflag, size = 0x4, scoped, tag = 'scoped memory for model_forward.1']
    #allocation5 [shape = 'u8[262144]{0}', space=vmem, size = 0x40000, scoped, tag = 'input window, operand 2, single buffered']
    #allocation6 [shape = 's32[1]{0}', space=sflag, size = 0x4, scoped, tag = 'scoped memory for model_forward.1']
    #allocation7 [shape = 'u8[262144]{0}', space=vmem, size = 0x40000, scoped, tag = 'input window, operand 3, single buffered']
    #allocation8 [shape = 'u8[65536]{0}', space=vmem, size = 0x10000, scoped, tag = 'input window, operand 5, single buffered']
    #allocation9 [shape = 's32[1]{0}', space=sflag, size = 0x4, scoped, tag = 'scoped memory for model_forward.1']
    #allocation10 [shape = 'u8[1024]{0}', space=vmem, size = 0x400, scoped, tag = 'output window, operand 0, single buffered']
    %12 = vsyncpa [#allocation3], 0
    %13 = vsyncpa [#allocation6], 0
    %14 = vsyncpa [#allocation9], 0
    %15 = vsyncpa [#allocation4], 0
    // Predicated region
    $region2: #{model_forward.1} parent=1 // pred_check
      _
    $region3: #{model_forward.1} parent=1 // pred_check_branch
      %17 = sbr.rel (0) target = $region5
    $region4: #{model_forward.1} parent=1 // pred_region
      _
    $region5: #{model_forward.1} parent=1 // pred_fallthru
      _
    // Predicated region
    $region6: #{model_forward.1} parent=1 // pred_check
      _
    $region7: #{model_forward.1} parent=1 // pred_check_branch
      %19 = sbr.rel (0) target = $region9
    $region8: #{model_forward.1} parent=1 // pred_region
      %s21 = ssub.s32 12800, 12800
      %22 = vsyncadd [#allocation3], %s21
      %s23 = sshll.u32 [#allocation2], 4
      %s24 = int_to_ptr.vmem [resolvable:$true] %s23
      %29 = dma.hbm_to_vmem [thread:$0]  %s1, 12800, %s24, [#allocation3], 256, 256, 16
    $region9: #{model_forward.1} parent=1 // pred_fallthru
      _
    // Predicated region
    $region10: #{model_forward.1} parent=1 // pred_check
      _
    $region11: #{model_forward.1} parent=1 // pred_check_branch
      %31 = sbr.rel (0) target = $region13
    $region12: #{model_forward.1} parent=1 // pred_region
      %s33 = ssub.s32 8192, 8192
      %34 = vsyncadd [#allocation6], %s33
      %s35 = sshll.u32 [#allocation5], 4
      %s36 = int_to_ptr.vmem [resolvable:$true] %s35
      %41 = dma.hbm_to_vmem [thread:$0]  %s2, 8192, %s36, [#allocation6], 512, 512, 32
    $region13: #{model_forward.1} parent=1 // pred_fallthru
      _
    // Predicated region
    $region14: #{model_forward.1} parent=1 // pred_check
      _
    $region15: #{model_forward.1} parent=1 // pred_check_branch
      %43 = sbr.rel (0) target = $region17
    $region16: #{model_forward.1} parent=1 // pred_region
      %s45 = ssub.s32 8192, 8192
      %46 = vsyncadd [#allocation6], %s45
      %s47 = sshll.u32 [#allocation7], 4
      %s48 = int_to_ptr.vmem [resolvable:$true] %s47
      %53 = dma.hbm_to_vmem [thread:$0]  %s3, 8192, %s48, [#allocation6], 512, 512, 32
    $region17: #{model_forward.1} parent=1 // pred_fallthru
      _
    // Predicated region
    $region18: #{model_forward.1} parent=1 // pred_check
      _
    $region19: #{model_forward.1} parent=1 // pred_check_branch
      %55 = sbr.rel (0) target = $region21
    $region20: #{model_forward.1} parent=1 // pred_region
      _
    $region21: #{model_forward.1} parent=1 // pred_fallthru
      _
    // Predicated region
    $region22: #{model_forward.1} parent=1 // pred_check
      _
    $region23: #{model_forward.1} parent=1 // pred_check_branch
      %57 = sbr.rel (0) target = $region25
    $region24: #{model_forward.1} parent=1 // pred_region
      %s59 = ssub.s32 2048, 2048
      %60 = vsyncadd [#allocation9], %s59
      %s61 = sshll.u32 [#allocation8], 4
      %s62 = int_to_ptr.vmem [resolvable:$true] %s61
      %67 = dma.hbm_to_vmem [thread:$0]  %s5, 2048, %s62, [#allocation9], 128, 128, 8
    $region25: #{model_forward.1} parent=1 // pred_fallthru
      _
    // Predicated region
    $region26: #{model_forward.1} parent=1 // pred_check
      _
    $region27: #{model_forward.1} parent=1 // pred_check_branch
      %69 = sbr.rel (0) target = $region29
    $region28: #{model_forward.1} parent=1 // pred_region
      _
    $region29: #{model_forward.1} parent=1 // pred_fallthru
      _
    // Predicated region
    $region30: #{model_forward.1} parent=1 // pred_check
      _
    $region31: #{model_forward.1} parent=1 // pred_check_branch
      %71 = sbr.rel (0) target = $region33
    $region32: #{model_forward.1} parent=1 // pred_region
      %72 = dma.done [#allocation3], 12800
    $region33: #{model_forward.1} parent=1 // pred_fallthru
      _
    // Predicated region
    $region34: #{model_forward.1} parent=1 // pred_check
      _
    $region35: #{model_forward.1} parent=1 // pred_check_branch
      %74 = sbr.rel (0) target = $region37
    $region36: #{model_forward.1} parent=1 // pred_region
      %75 = dma.done [#allocation6], 8192
    $region37: #{model_forward.1} parent=1 // pred_fallthru
      _
    // Predicated region
    $region38: #{model_forward.1} parent=1 // pred_check
      _
    $region39: #{model_forward.1} parent=1 // pred_check_branch
      %77 = sbr.rel (0) target = $region41
    $region40: #{model_forward.1} parent=1 // pred_region
      %78 = dma.done [#allocation6], 8192
    $region41: #{model_forward.1} parent=1 // pred_fallthru
      _
    // Predicated region
    $region42: #{model_forward.1} parent=1 // pred_check
      _
    $region43: #{model_forward.1} parent=1 // pred_check_branch
      %80 = sbr.rel (0) target = $region45
    $region44: #{model_forward.1} parent=1 // pred_region
      %81 = dma.done [#allocation9], 2048
    $region45: #{model_forward.1} parent=1 // pred_fallthru
      _
    %v82 = vld [vmem:[%s0] sm:$0xff]
    %v83 = vld [vmem:[%s0 + $0x8] sm:$0xff]
    %v84 = vld [vmem:[%s0 + $0x10] sm:$0xff]
    %v85 = vld [vmem:[%s0 + $0x18] sm:$0xff]
    %v86 = vld [vmem:[%s0 + $0x20] sm:$0xff]
    %v87 = vld [vmem:[%s0 + $0x28] sm:$0xff]
    %v88 = vld [vmem:[%s0 + $0x30] sm:$0xff]
    %v89 = vld [vmem:[%s0 + $0x38] sm:$0xff]
    %v90 = vld [vmem:[#allocation2] sm:$0xff]
    %v91 = vld [vmem:[#allocation2 + $0x8] sm:$0xff]
    %v92 = vld [vmem:[#allocation2 + $0x10] sm:$0xff]
    %v93 = vld [vmem:[#allocation2 + $0x18] sm:$0xff]
    %v94 = vld [vmem:[#allocation2 + $0x20] sm:$0xff]
    %v95 = vld [vmem:[#allocation2 + $0x28] sm:$0xff]
    %v96 = vld [vmem:[#allocation2 + $0x30] sm:$0xff]
    %v97 = vld [vmem:[#allocation2 + $0x38] sm:$0xff]
    %v98 = vld [vmem:[#allocation2 + $0x40] sm:$0xff]
    %v99 = vld [vmem:[#allocation2 + $0x48] sm:$0xff]
    %v100 = vld [vmem:[#allocation2 + $0x50] sm:$0xff]
    %v101 = vld [vmem:[#allocation2 + $0x58] sm:$0xff]
    %v102 = vld [vmem:[#allocation2 + $0x60] sm:$0xff]
    %v103 = vld [vmem:[#allocation2 + $0x68] sm:$0xff]
    %v104 = vld [vmem:[#allocation2 + $0x70] sm:$0xff]
    %v105 = vld [vmem:[#allocation2 + $0x78] sm:$0xff]
    %v106 = vld [vmem:[#allocation2 + $0x80] sm:$0xff]
    %v107 = vld [vmem:[#allocation2 + $0x88] sm:$0xff]
    %v108 = vld [vmem:[#allocation2 + $0x90] sm:$0xff]
    %v109 = vld [vmem:[#allocation2 + $0x98] sm:$0xff]
    %v110 = vld [vmem:[#allocation2 + $0xa0] sm:$0xff]
    %v111 = vld [vmem:[#allocation2 + $0xa8] sm:$0xff]
    %v112 = vld [vmem:[#allocation2 + $0xb0] sm:$0xff]
    %v113 = vld [vmem:[#allocation2 + $0xb8] sm:$0xff]
    %v114 = vld [vmem:[#allocation2 + $0xc0] sm:$0xff]
    %v115 = vld [vmem:[#allocation2 + $0xc8] sm:$0xff]
    %v116 = vld [vmem:[#allocation2 + $0xd0] sm:$0xff]
    %v117 = vld [vmem:[#allocation2 + $0xd8] sm:$0xff]
    %v118 = vld [vmem:[#allocation2 + $0xe0] sm:$0xff]
    %v119 = vld [vmem:[#allocation2 + $0xe8] sm:$0xff]
    %v120 = vld [vmem:[#allocation2 + $0xf0] sm:$0xff]
    %v121 = vld [vmem:[#allocation2 + $0xf8] sm:$0xff]
    %v122 = vld [vmem:[#allocation2 + $0x100] sm:$0xff]
    %v123 = vld [vmem:[#allocation2 + $0x108] sm:$0xff]
    %v124 = vld [vmem:[#allocation2 + $0x110] sm:$0xff]
    %v125 = vld [vmem:[#allocation2 + $0x118] sm:$0xff]
    %v126 = vld [vmem:[#allocation2 + $0x120] sm:$0xff]
    %v127 = vld [vmem:[#allocation2 + $0x128] sm:$0xff]
    %v128 = vld [vmem:[#allocation2 + $0x130] sm:$0xff]
    %v129 = vld [vmem:[#allocation2 + $0x138] sm:$0xff]
    %v130 = vld [vmem:[#allocation2 + $0x140] sm:$0xff]
    %v131 = vld [vmem:[#allocation2 + $0x148] sm:$0xff]
    %v132 = vld [vmem:[#allocation2 + $0x150] sm:$0xff]
    %v133 = vld [vmem:[#allocation2 + $0x158] sm:$0xff]
    %v134 = vld [vmem:[#allocation2 + $0x160] sm:$0xff]
    %v135 = vld [vmem:[#allocation2 + $0x168] sm:$0xff]
    %v136 = vld [vmem:[#allocation2 + $0x170] sm:$0xff]
    %v137 = vld [vmem:[#allocation2 + $0x178] sm:$0xff]
    %v138 = vld [vmem:[#allocation2 + $0x180] sm:$0xff]
    %v139 = vld [vmem:[#allocation2 + $0x188] sm:$0xff]
    %v140 = vld [vmem:[#allocation2 + $0x190] sm:$0xff]
    %v141 = vld [vmem:[#allocation2 + $0x198] sm:$0xff]
    %v142 = vld [vmem:[#allocation2 + $0x1a0] sm:$0xff]
    %v143 = vld [vmem:[#allocation2 + $0x1a8] sm:$0xff]
    %v144 = vld [vmem:[#allocation2 + $0x1b0] sm:$0xff]
    %v145 = vld [vmem:[#allocation2 + $0x1b8] sm:$0xff]
    %v146 = vld [vmem:[#allocation2 + $0x1c0] sm:$0xff]
    %v147 = vld [vmem:[#allocation2 + $0x1c8] sm:$0xff]
    %v148 = vld [vmem:[#allocation2 + $0x1d0] sm:$0xff]
    %v149 = vld [vmem:[#allocation2 + $0x1d8] sm:$0xff]
    %v150 = vld [vmem:[#allocation2 + $0x1e0] sm:$0xff]
    %v151 = vld [vmem:[#allocation2 + $0x1e8] sm:$0xff]
    %v152 = vld [vmem:[#allocation2 + $0x1f0] sm:$0xff]
    %v153 = vld [vmem:[#allocation2 + $0x1f8] sm:$0xff]
    %v154 = vld [vmem:[#allocation2 + $0x200] sm:$0xff]
    %v155 = vld [vmem:[#allocation2 + $0x208] sm:$0xff]
    %v156 = vld [vmem:[#allocation2 + $0x210] sm:$0xff]
    %v157 = vld [vmem:[#allocation2 + $0x218] sm:$0xff]
    %v158 = vld [vmem:[#allocation2 + $0x220] sm:$0xff]
    %v159 = vld [vmem:[#allocation2 + $0x228] sm:$0xff]
    %v160 = vld [vmem:[#allocation2 + $0x230] sm:$0xff]
    %v161 = vld [vmem:[#allocation2 + $0x238] sm:$0xff]
    %v162 = vld [vmem:[#allocation2 + $0x240] sm:$0xff]
    %v163 = vld [vmem:[#allocation2 + $0x248] sm:$0xff]
    %v164 = vld [vmem:[#allocation2 + $0x250] sm:$0xff]
    %v165 = vld [vmem:[#allocation2 + $0x258] sm:$0xff]
    %v166 = vld [vmem:[#allocation2 + $0x260] sm:$0xff]
    %v167 = vld [vmem:[#allocation2 + $0x268] sm:$0xff]
    %v168 = vld [vmem:[#allocation2 + $0x270] sm:$0xff]
    %v169 = vld [vmem:[#allocation2 + $0x278] sm:$0xff]
    %v170 = vld [vmem:[#allocation2 + $0x280] sm:$0xff]
    %v171 = vld [vmem:[#allocation2 + $0x288] sm:$0xff]
    %v172 = vld [vmem:[#allocation2 + $0x290] sm:$0xff]
    %v173 = vld [vmem:[#allocation2 + $0x298] sm:$0xff]
    %v174 = vld [vmem:[#allocation2 + $0x2a0] sm:$0xff]
    %v175 = vld [vmem:[#allocation2 + $0x2a8] sm:$0xff]
    %v176 = vld [vmem:[#allocation2 + $0x2b0] sm:$0xff]
    %v177 = vld [vmem:[#allocation2 + $0x2b8] sm:$0xff]
    %v178 = vld [vmem:[#allocation2 + $0x2c0] sm:$0xff]
    %v179 = vld [vmem:[#allocation2 + $0x2c8] sm:$0xff]
    %v180 = vld [vmem:[#allocation2 + $0x2d0] sm:$0xff]
    %v181 = vld [vmem:[#allocation2 + $0x2d8] sm:$0xff]
    %v182 = vld [vmem:[#allocation2 + $0x2e0] sm:$0xff]
    %v183 = vld [vmem:[#allocation2 + $0x2e8] sm:$0xff]
    %v184 = vld [vmem:[#allocation2 + $0x2f0] sm:$0xff]
    %v185 = vld [vmem:[#allocation2 + $0x2f8] sm:$0xff]
    %v186 = vld [vmem:[#allocation2 + $0x300] sm:$0xff]
    %v187 = vld [vmem:[#allocation2 + $0x308] sm:$0xff]
    %v188 = vld [vmem:[#allocation2 + $0x310] sm:$0xff]
    %v189 = vld [vmem:[#allocation2 + $0x318] sm:$0xff]
    %vm190 = vcmask 130048
    %v192 = vsel %vm190, %v85, 0
    %v195 = vsel %vm190, %v89, 0
    %197 = vmatprep.subr.mxu0 %v121
    %198 = vmatpush1.msra.mxu0 %v120
    %199 = vmatprep.subr.mxu0 %v119
    %200 = vmatpush1.msra.mxu0 %v118
    %201 = vmatprep.subr.mxu0 %v117
    %202 = vmatpush1.msra.mxu0 %v116
    %203 = vmatprep.subr.mxu0 %v115
    %204 = vmatpush1.msra.mxu0 %v114
    %205 = vmatprep.subr.mxu0 %v113
    %206 = vmatpush1.msra.mxu0 %v112
    %207 = vmatprep.subr.mxu0 %v111
    %208 = vmatpush1.msra.mxu0 %v110
    %209 = vmatprep.subr.mxu0 %v109
    %210 = vmatpush1.msra.mxu0 %v108
    %211 = vmatprep.subr.mxu0 %v107
    %212 = vmatpush1.msra.mxu0 %v106
    %213 = vmatprep.subr.mxu0 %v105
    %214 = vmatpush1.msra.mxu0 %v104
    %215 = vmatprep.subr.mxu0 %v103
    %216 = vmatpush1.msra.mxu0 %v102
    %217 = vmatprep.subr.mxu0 %v101
    %218 = vmatpush1.msra.mxu0 %v100
    %219 = vmatprep.subr.mxu0 %v99
    %220 = vmatpush1.msra.mxu0 %v98
    %221 = vmatprep.subr.mxu0 %v97
    %222 = vmatpush1.msra.mxu0 %v96
    %223 = vmatprep.subr.mxu0 %v95
    %224 = vmatpush1.msra.mxu0 %v94
    %225 = vmatprep.subr.mxu0 %v93
    %226 = vmatpush1.msra.mxu0 %v92
    %227 = vmatprep.subr.mxu0 %v91
    %228 = vmatpush1.msra.mxu0 %v90
    %229 = vmatprep.subr.mxu0 %v153
    %230 = vmatpush2.msra.mxu0 %v152
    %231 = vmatprep.subr.mxu0 %v151
    %232 = vmatpush2.msra.mxu0 %v150
    %233 = vmatprep.subr.mxu0 %v149
    %234 = vmatpush2.msra.mxu0 %v148
    %235 = vmatprep.subr.mxu0 %v147
    %236 = vmatpush2.msra.mxu0 %v146
    %237 = vmatprep.subr.mxu0 %v145
    %238 = vmatpush2.msra.mxu0 %v144
    %239 = vmatprep.subr.mxu0 %v143
    %240 = vmatpush2.msra.mxu0 %v142
    %241 = vmatprep.subr.mxu0 %v141
    %242 = vmatpush2.msra.mxu0 %v140
    %243 = vmatprep.subr.mxu0 %v139
    %244 = vmatpush2.msra.mxu0 %v138
    %245 = vmatprep.subr.mxu0 %v137
    %246 = vmatpush2.msra.mxu0 %v136
    %247 = vmatprep.subr.mxu0 %v135
    %248 = vmatpush2.msra.mxu0 %v134
    %249 = vmatprep.subr.mxu0 %v133
    %250 = vmatpush2.msra.mxu0 %v132
    %251 = vmatprep.subr.mxu0 %v131
    %252 = vmatpush2.msra.mxu0 %v130
    %253 = vmatprep.subr.mxu0 %v129
    %254 = vmatpush2.msra.mxu0 %v128
    %255 = vmatprep.subr.mxu0 %v127
    %256 = vmatpush2.msra.mxu0 %v126
    %257 = vmatprep.subr.mxu0 %v125
    %258 = vmatpush2.msra.mxu0 %v124
    %259 = vmatprep.subr.mxu0 %v123
    %260 = vmatpush2.msra.mxu0 %v122
    %261 = vmatprep.mubr.f32.mxu0 %v83
    %262 = vmatmul.mubr.f32.gmra.mxu0 %v82
    %v263 = vpop.f32.mrf.mxu0
    %v264 = vadd.f32 0.0, %v263
    %v265 = vpop.f32.mrf.mxu0
    %v266 = vadd.f32 0.0, %v265
    %267 = vmatprep.mubr.f32.mxu0 %v87
    %268 = vmatmul.mubr.f32.gmra.mxu0 %v86
    %v269 = vpop.f32.mrf.mxu0
    %v270 = vadd.f32 0.0, %v269
    %v271 = vpop.f32.mrf.mxu0
    %v272 = vadd.f32 0.0, %v271
    %273 = vdwg.mxu0
    %274 = vmatprep.subr.mxu0 %v185
    %275 = vmatpush1.msra.mxu0 %v184
    %276 = vmatprep.subr.mxu0 %v183
    %277 = vmatpush1.msra.mxu0 %v182
    %278 = vmatprep.subr.mxu0 %v181
    %279 = vmatpush1.msra.mxu0 %v180
    %280 = vmatprep.subr.mxu0 %v179
    %281 = vmatpush1.msra.mxu0 %v178
    %282 = vmatprep.subr.mxu0 %v177
    %283 = vmatpush1.msra.mxu0 %v176
    %284 = vmatprep.subr.mxu0 %v175
    %285 = vmatpush1.msra.mxu0 %v174
    %286 = vmatprep.subr.mxu0 %v173
    %287 = vmatpush1.msra.mxu0 %v172
    %288 = vmatprep.subr.mxu0 %v171
    %289 = vmatpush1.msra.mxu0 %v170
    %290 = vmatprep.subr.mxu0 %v169
    %291 = vmatpush1.msra.mxu0 %v168
    %292 = vmatprep.subr.mxu0 %v167
    %293 = vmatpush1.msra.mxu0 %v166
    %294 = vmatprep.subr.mxu0 %v165
    %295 = vmatpush1.msra.mxu0 %v164
    %296 = vmatprep.subr.mxu0 %v163
    %297 = vmatpush1.msra.mxu0 %v162
    %298 = vmatprep.subr.mxu0 %v161
    %299 = vmatpush1.msra.mxu0 %v160
    %300 = vmatprep.subr.mxu0 %v159
    %301 = vmatpush1.msra.mxu0 %v158
    %302 = vmatprep.subr.mxu0 %v157
    %303 = vmatpush1.msra.mxu0 %v156
    %304 = vmatprep.subr.mxu0 %v155
    %305 = vmatpush1.msra.mxu0 %v154
    %306 = vmatprep.subr.mxu0 0.0
    %307 = vmatpush2.msra.mxu0 0.0
    %308 = vmatprep.subr.mxu0 0.0
    %309 = vmatpush2.msra.mxu0 0.0
    %310 = vmatprep.subr.mxu0 0.0
    %311 = vmatpush2.msra.mxu0 0.0
    %312 = vmatprep.subr.mxu0 0.0
    %313 = vmatpush2.msra.mxu0 0.0
    %314 = vmatprep.subr.mxu0 0.0
    %315 = vmatpush2.msra.mxu0 0.0
    %316 = vmatprep.subr.mxu0 0.0
    %317 = vmatpush2.msra.mxu0 0.0
    %318 = vmatprep.subr.mxu0 0.0
    %319 = vmatpush2.msra.mxu0 0.0
    %320 = vmatprep.subr.mxu0 0.0
    %321 = vmatpush2.msra.mxu0 0.0
    %322 = vmatprep.subr.mxu0 0.0
    %323 = vmatpush2.msra.mxu0 0.0
    %324 = vmatprep.subr.mxu0 0.0
    %325 = vmatpush2.msra.mxu0 0.0
    %326 = vmatprep.subr.mxu0 0.0
    %327 = vmatpush2.msra.mxu0 0.0
    %328 = vmatprep.subr.mxu0 0.0
    %329 = vmatpush2.msra.mxu0 0.0
    %330 = vmatprep.subr.mxu0 0.0
    %331 = vmatpush2.msra.mxu0 0.0
    %332 = vmatprep.subr.mxu0 0.0
    %333 = vmatpush2.msra.mxu0 0.0
    %334 = vmatprep.subr.mxu0 %v189
    %335 = vmatpush2.msra.mxu0 %v188
    %336 = vmatprep.subr.mxu0 %v187
    %337 = vmatpush2.msra.mxu0 %v186
    %338 = vmatprep.mubr.f32.mxu0 %v192
    %339 = vmatmul.mubr.f32.gmra.mxu0 %v84
    %v340 = vpop.f32.mrf.mxu0
    %v341 = vadd.f32 %v264, %v340
    %v342 = vpop.f32.mrf.mxu0
    %v343 = vadd.f32 %v266, %v342
    %344 = vmatprep.mubr.f32.mxu0 %v195
    %345 = vmatmul.mubr.f32.gmra.mxu0 %v88
    %v346 = vpop.f32.mrf.mxu0
    %v347 = vadd.f32 %v270, %v346
    %v348 = vpop.f32.mrf.mxu0
    %v349 = vadd.f32 %v272, %v348
    %350 = vdwg.mxu0
    %v351 = vmul.f32 %v341, %v341
    %v352 = vmul.f32 %v347, %v347
    %v353 = vmul.f32 %v343, %v343
    %v354 = vmul.f32 %v349, %v349
    %v355 = vadd.f32 %v351, %v353
    %v356 = vadd.f32 %v352, %v354
    %v357 = vadd.f32 %v355, 1e-09
    %v358 = vadd.f32 %v356, 1e-09
    %v359 = vlog2.pop %v357
    %v360 = vmul.f32 %v359, 0.6931472
    %v361 = vlog2.pop %v358
    %v362 = vmul.f32 %v361, 0.6931472
    %v363 = vmul.f32 %v360, 0.4342945
    %v364 = vmul.f32 %v362, 0.4342945
    %v365 = vld [vmem:[#allocation5] sm:$0xff]
    %v366 = vld [vmem:[#allocation5 + $0x8] sm:$0xff]
    %v367 = vld [vmem:[#allocation5 + $0x10] sm:$0xff]
    %v368 = vld [vmem:[#allocation5 + $0x18] sm:$0xff]
    %v369 = vld [vmem:[#allocation5 + $0x20] sm:$0xff]
    %v370 = vld [vmem:[#allocation5 + $0x28] sm:$0xff]
    %v371 = vld [vmem:[#allocation5 + $0x30] sm:$0xff]
    %v372 = vld [vmem:[#allocation5 + $0x38] sm:$0xff]
    %v373 = vld [vmem:[#allocation5 + $0x40] sm:$0xff]
    %v374 = vld [vmem:[#allocation5 + $0x48] sm:$0xff]
    %v375 = vld [vmem:[#allocation5 + $0x50] sm:$0xff]
    %v376 = vld [vmem:[#allocation5 + $0x58] sm:$0xff]
    %v377 = vld [vmem:[#allocation5 + $0x60] sm:$0xff]
    %v378 = vld [vmem:[#allocation5 + $0x68] sm:$0xff]
    %v379 = vld [vmem:[#allocation5 + $0x70] sm:$0xff]
    %v380 = vld [vmem:[#allocation5 + $0x78] sm:$0xff]
    %v381 = vld [vmem:[#allocation5 + $0x80] sm:$0xff]
    %v382 = vld [vmem:[#allocation5 + $0x88] sm:$0xff]
    %v383 = vld [vmem:[#allocation5 + $0x90] sm:$0xff]
    %v384 = vld [vmem:[#allocation5 + $0x98] sm:$0xff]
    %v385 = vld [vmem:[#allocation5 + $0xa0] sm:$0xff]
    %v386 = vld [vmem:[#allocation5 + $0xa8] sm:$0xff]
    %v387 = vld [vmem:[#allocation5 + $0xb0] sm:$0xff]
    %v388 = vld [vmem:[#allocation5 + $0xb8] sm:$0xff]
    %v389 = vld [vmem:[#allocation5 + $0xc0] sm:$0xff]
    %v390 = vld [vmem:[#allocation5 + $0xc8] sm:$0xff]
    %v391 = vld [vmem:[#allocation5 + $0xd0] sm:$0xff]
    %v392 = vld [vmem:[#allocation5 + $0xd8] sm:$0xff]
    %v393 = vld [vmem:[#allocation5 + $0xe0] sm:$0xff]
    %v394 = vld [vmem:[#allocation5 + $0xe8] sm:$0xff]
    %v395 = vld [vmem:[#allocation5 + $0xf0] sm:$0xff]
    %v396 = vld [vmem:[#allocation5 + $0xf8] sm:$0xff]
    %v397 = vld [vmem:[#allocation5 + $0x100] sm:$0xff]
    %v398 = vld [vmem:[#allocation5 + $0x108] sm:$0xff]
    %v399 = vld [vmem:[#allocation5 + $0x110] sm:$0xff]
    %v400 = vld [vmem:[#allocation5 + $0x118] sm:$0xff]
    %v401 = vld [vmem:[#allocation5 + $0x120] sm:$0xff]
    %v402 = vld [vmem:[#allocation5 + $0x128] sm:$0xff]
    %v403 = vld [vmem:[#allocation5 + $0x130] sm:$0xff]
    %v404 = vld [vmem:[#allocation5 + $0x138] sm:$0xff]
    %v405 = vld [vmem:[#allocation5 + $0x140] sm:$0xff]
    %v406 = vld [vmem:[#allocation5 + $0x148] sm:$0xff]
    %v407 = vld [vmem:[#allocation5 + $0x150] sm:$0xff]
    %v408 = vld [vmem:[#allocation5 + $0x158] sm:$0xff]
    %v409 = vld [vmem:[#allocation5 + $0x160] sm:$0xff]
    %v410 = vld [vmem:[#allocation5 + $0x168] sm:$0xff]
    %v411 = vld [vmem:[#allocation5 + $0x170] sm:$0xff]
    %v412 = vld [vmem:[#allocation5 + $0x178] sm:$0xff]
    %v413 = vld [vmem:[#allocation5 + $0x180] sm:$0xff]
    %v414 = vld [vmem:[#allocation5 + $0x188] sm:$0xff]
    %v415 = vld [vmem:[#allocation5 + $0x190] sm:$0xff]
    %v416 = vld [vmem:[#allocation5 + $0x198] sm:$0xff]
    %v417 = vld [vmem:[#allocation5 + $0x1a0] sm:$0xff]
    %v418 = vld [vmem:[#allocation5 + $0x1a8] sm:$0xff]
    %v419 = vld [vmem:[#allocation5 + $0x1b0] sm:$0xff]
    %v420 = vld [vmem:[#allocation5 + $0x1b8] sm:$0xff]
    %v421 = vld [vmem:[#allocation5 + $0x1c0] sm:$0xff]
    %v422 = vld [vmem:[#allocation5 + $0x1c8] sm:$0xff]
    %v423 = vld [vmem:[#allocation5 + $0x1d0] sm:$0xff]
    %v424 = vld [vmem:[#allocation5 + $0x1d8] sm:$0xff]
    %v425 = vld [vmem:[#allocation5 + $0x1e0] sm:$0xff]
    %v426 = vld [vmem:[#allocation5 + $0x1e8] sm:$0xff]
    %v427 = vld [vmem:[#allocation5 + $0x1f0] sm:$0xff]
    %v428 = vld [vmem:[#allocation5 + $0x1f8] sm:$0xff]
    %v429 = vld [vmem:[%s4] sm:$0xf]
    %v431 = vlaneseq
    %v432 = vshrl.u32 %v431, 7
    %v433 = vsub.s32 0, %v432
    %v434 = vrot.slane %v429, %v433
    %v435 = vlaneseq
    %v436 = vshrl.u32 %v435, 7
    %v437 = vsub.s32 1, %v436
    %v438 = vrot.slane %v429, %v437
    %v439 = vlaneseq
    %v440 = vshrl.u32 %v439, 7
    %v441 = vsub.s32 2, %v440
    %v442 = vrot.slane %v429, %v441
    %v443 = vlaneseq
    %v444 = vshrl.u32 %v443, 7
    %v445 = vsub.s32 3, %v444
    %v446 = vrot.slane %v429, %v445
    %451 = vmatprep.subr.mxu0 %v426
    %452 = vmatpush1.msra.mxu0 %v425
    %453 = vmatprep.subr.mxu0 %v422
    %454 = vmatpush1.msra.mxu0 %v421
    %455 = vmatprep.subr.mxu0 %v418
    %456 = vmatpush1.msra.mxu0 %v417
    %457 = vmatprep.subr.mxu0 %v414
    %458 = vmatpush1.msra.mxu0 %v413
    %459 = vmatprep.subr.mxu0 %v410
    %460 = vmatpush1.msra.mxu0 %v409
    %461 = vmatprep.subr.mxu0 %v406
    %462 = vmatpush1.msra.mxu0 %v405
    %463 = vmatprep.subr.mxu0 %v402
    %464 = vmatpush1.msra.mxu0 %v401
    %465 = vmatprep.subr.mxu0 %v398
    %466 = vmatpush1.msra.mxu0 %v397
    %467 = vmatprep.subr.mxu0 %v394
    %468 = vmatpush1.msra.mxu0 %v393
    %469 = vmatprep.subr.mxu0 %v390
    %470 = vmatpush1.msra.mxu0 %v389
    %471 = vmatprep.subr.mxu0 %v386
    %472 = vmatpush1.msra.mxu0 %v385
    %473 = vmatprep.subr.mxu0 %v382
    %474 = vmatpush1.msra.mxu0 %v381
    %475 = vmatprep.subr.mxu0 %v378
    %476 = vmatpush1.msra.mxu0 %v377
    %477 = vmatprep.subr.mxu0 %v374
    %478 = vmatpush1.msra.mxu0 %v373
    %479 = vmatprep.subr.mxu0 %v370
    %480 = vmatpush1.msra.mxu0 %v369
    %481 = vmatprep.subr.mxu0 %v366
    %482 = vmatpush1.msra.mxu0 %v365
    %483 = vmatprep.subr.mxu0 0.0
    %484 = vmatpush2.msra.mxu0 0.0
    %485 = vmatprep.subr.mxu0 0.0
    %486 = vmatpush2.msra.mxu0 0.0
    %487 = vmatprep.subr.mxu0 0.0
    %488 = vmatpush2.msra.mxu0 0.0
    %489 = vmatprep.subr.mxu0 0.0
    %490 = vmatpush2.msra.mxu0 0.0
    %491 = vmatprep.subr.mxu0 0.0
    %492 = vmatpush2.msra.mxu0 0.0
    %493 = vmatprep.subr.mxu0 0.0
    %494 = vmatpush2.msra.mxu0 0.0
    %495 = vmatprep.subr.mxu0 0.0
    %496 = vmatpush2.msra.mxu0 0.0
    %497 = vmatprep.subr.mxu0 0.0
    %498 = vmatpush2.msra.mxu0 0.0
    %499 = vmatprep.subr.mxu0 0.0
    %500 = vmatpush2.msra.mxu0 0.0
    %501 = vmatprep.subr.mxu0 0.0
    %502 = vmatpush2.msra.mxu0 0.0
    %503 = vmatprep.subr.mxu0 0.0
    %504 = vmatpush2.msra.mxu0 0.0
    %505 = vmatprep.subr.mxu0 0.0
    %506 = vmatpush2.msra.mxu0 0.0
    %507 = vmatprep.subr.mxu0 0.0
    %508 = vmatpush2.msra.mxu0 0.0
    %509 = vmatprep.subr.mxu0 0.0
    %510 = vmatpush2.msra.mxu0 0.0
    %511 = vmatprep.subr.mxu0 0.0
    %512 = vmatpush2.msra.mxu0 0.0
    %513 = vmatprep.subr.mxu0 0.0
    %514 = vmatpush2.msra.mxu0 0.0
    %515 = vmatprep.mubr.f32.mxu0 0.0
    %516 = vmatmul.mubr.f32.gmra.mxu0 %v363
    %v517 = vpop.f32.mrf.mxu0
    %v518 = vadd.f32 %v434, %v517
    %v519 = vpop.f32.mrf.mxu0
    %v520 = vadd.f32 %v438, %v519
    %521 = vmatprep.mubr.f32.mxu0 0.0
    %522 = vmatmul.mubr.f32.gmra.mxu0 %v364
    %v523 = vpop.f32.mrf.mxu0
    %v524 = vadd.f32 %v434, %v523
    %v525 = vpop.f32.mrf.mxu0
    %v526 = vadd.f32 %v438, %v525
    %527 = vdwg.mxu0
    %528 = vmatprep.subr.mxu0 %v428
    %529 = vmatpush1.msra.mxu0 %v427
    %530 = vmatprep.subr.mxu0 %v424
    %531 = vmatpush1.msra.mxu0 %v423
    %532 = vmatprep.subr.mxu0 %v420
    %533 = vmatpush1.msra.mxu0 %v419
    %534 = vmatprep.subr.mxu0 %v416
    %535 = vmatpush1.msra.mxu0 %v415
    %536 = vmatprep.subr.mxu0 %v412
    %537 = vmatpush1.msra.mxu0 %v411
    %538 = vmatprep.subr.mxu0 %v408
    %539 = vmatpush1.msra.mxu0 %v407
    %540 = vmatprep.subr.mxu0 %v404
    %541 = vmatpush1.msra.mxu0 %v403
    %542 = vmatprep.subr.mxu0 %v400
    %543 = vmatpush1.msra.mxu0 %v399
    %544 = vmatprep.subr.mxu0 %v396
    %545 = vmatpush1.msra.mxu0 %v395
    %546 = vmatprep.subr.mxu0 %v392
    %547 = vmatpush1.msra.mxu0 %v391
    %548 = vmatprep.subr.mxu0 %v388
    %549 = vmatpush1.msra.mxu0 %v387
    %550 = vmatprep.subr.mxu0 %v384
    %551 = vmatpush1.msra.mxu0 %v383
    %552 = vmatprep.subr.mxu0 %v380
    %553 = vmatpush1.msra.mxu0 %v379
    %554 = vmatprep.subr.mxu0 %v376
    %555 = vmatpush1.msra.mxu0 %v375
    %556 = vmatprep.subr.mxu0 %v372
    %557 = vmatpush1.msra.mxu0 %v371
    %558 = vmatprep.subr.mxu0 %v368
    %559 = vmatpush1.msra.mxu0 %v367
    %560 = vmatprep.subr.mxu0 0.0
    %561 = vmatpush2.msra.mxu0 0.0
    %562 = vmatprep.subr.mxu0 0.0
    %563 = vmatpush2.msra.mxu0 0.0
    %564 = vmatprep.subr.mxu0 0.0
    %565 = vmatpush2.msra.mxu0 0.0
    %566 = vmatprep.subr.mxu0 0.0
    %567 = vmatpush2.msra.mxu0 0.0
    %568 = vmatprep.subr.mxu0 0.0
    %569 = vmatpush2.msra.mxu0 0.0
    %570 = vmatprep.subr.mxu0 0.0
    %571 = vmatpush2.msra.mxu0 0.0
    %572 = vmatprep.subr.mxu0 0.0
    %573 = vmatpush2.msra.mxu0 0.0
    %574 = vmatprep.subr.mxu0 0.0
    %575 = vmatpush2.msra.mxu0 0.0
    %576 = vmatprep.subr.mxu0 0.0
    %577 = vmatpush2.msra.mxu0 0.0
    %578 = vmatprep.subr.mxu0 0.0
    %579 = vmatpush2.msra.mxu0 0.0
    %580 = vmatprep.subr.mxu0 0.0
    %581 = vmatpush2.msra.mxu0 0.0
    %582 = vmatprep.subr.mxu0 0.0
    %583 = vmatpush2.msra.mxu0 0.0
    %584 = vmatprep.subr.mxu0 0.0
    %585 = vmatpush2.msra.mxu0 0.0
    %586 = vmatprep.subr.mxu0 0.0
    %587 = vmatpush2.msra.mxu0 0.0
    %588 = vmatprep.subr.mxu0 0.0
    %589 = vmatpush2.msra.mxu0 0.0
    %590 = vmatprep.subr.mxu0 0.0
    %591 = vmatpush2.msra.mxu0 0.0
    %592 = vmatprep.mubr.f32.mxu0 0.0
    %593 = vmatmul.mubr.f32.gmra.mxu0 %v363
    %v594 = vpop.f32.mrf.mxu0
    %v595 = vadd.f32 %v442, %v594
    %v596 = vpop.f32.mrf.mxu0
    %v597 = vadd.f32 %v446, %v596
    %598 = vmatprep.mubr.f32.mxu0 0.0
    %599 = vmatmul.mubr.f32.gmra.mxu0 %v364
    %v600 = vpop.f32.mrf.mxu0
    %v601 = vadd.f32 %v442, %v600
    %v602 = vpop.f32.mrf.mxu0
    %v603 = vadd.f32 %v446, %v602
    %604 = vdwg.mxu0
    %v605 = vld [vmem:[#allocation7] sm:$0xff]
    %v606 = vld [vmem:[#allocation7 + $0x8] sm:$0xff]
    %v607 = vld [vmem:[#allocation7 + $0x10] sm:$0xff]
    %v608 = vld [vmem:[#allocation7 + $0x18] sm:$0xff]
    %v609 = vld [vmem:[#allocation7 + $0x20] sm:$0xff]
    %v610 = vld [vmem:[#allocation7 + $0x28] sm:$0xff]
    %v611 = vld [vmem:[#allocation7 + $0x30] sm:$0xff]
    %v612 = vld [vmem:[#allocation7 + $0x38] sm:$0xff]
    %v613 = vld [vmem:[#allocation7 + $0x40] sm:$0xff]
    %v614 = vld [vmem:[#allocation7 + $0x48] sm:$0xff]
    %v615 = vld [vmem:[#allocation7 + $0x50] sm:$0xff]
    %v616 = vld [vmem:[#allocation7 + $0x58] sm:$0xff]
    %v617 = vld [vmem:[#allocation7 + $0x60] sm:$0xff]
    %v618 = vld [vmem:[#allocation7 + $0x68] sm:$0xff]
    %v619 = vld [vmem:[#allocation7 + $0x70] sm:$0xff]
    %v620 = vld [vmem:[#allocation7 + $0x78] sm:$0xff]
    %v621 = vld [vmem:[#allocation7 + $0x80] sm:$0xff]
    %v622 = vld [vmem:[#allocation7 + $0x88] sm:$0xff]
    %v623 = vld [vmem:[#allocation7 + $0x90] sm:$0xff]
    %v624 = vld [vmem:[#allocation7 + $0x98] sm:$0xff]
    %v625 = vld [vmem:[#allocation7 + $0xa0] sm:$0xff]
    %v626 = vld [vmem:[#allocation7 + $0xa8] sm:$0xff]
    %v627 = vld [vmem:[#allocation7 + $0xb0] sm:$0xff]
    %v628 = vld [vmem:[#allocation7 + $0xb8] sm:$0xff]
    %v629 = vld [vmem:[#allocation7 + $0xc0] sm:$0xff]
    %v630 = vld [vmem:[#allocation7 + $0xc8] sm:$0xff]
    %v631 = vld [vmem:[#allocation7 + $0xd0] sm:$0xff]
    %v632 = vld [vmem:[#allocation7 + $0xd8] sm:$0xff]
    %v633 = vld [vmem:[#allocation7 + $0xe0] sm:$0xff]
    %v634 = vld [vmem:[#allocation7 + $0xe8] sm:$0xff]
    %v635 = vld [vmem:[#allocation7 + $0xf0] sm:$0xff]
    %v636 = vld [vmem:[#allocation7 + $0xf8] sm:$0xff]
    %v637 = vld [vmem:[#allocation7 + $0x100] sm:$0xff]
    %v638 = vld [vmem:[#allocation7 + $0x108] sm:$0xff]
    %v639 = vld [vmem:[#allocation7 + $0x110] sm:$0xff]
    %v640 = vld [vmem:[#allocation7 + $0x118] sm:$0xff]
    %v641 = vld [vmem:[#allocation7 + $0x120] sm:$0xff]
    %v642 = vld [vmem:[#allocation7 + $0x128] sm:$0xff]
    %v643 = vld [vmem:[#allocation7 + $0x130] sm:$0xff]
    %v644 = vld [vmem:[#allocation7 + $0x138] sm:$0xff]
    %v645 = vld [vmem:[#allocation7 + $0x140] sm:$0xff]
    %v646 = vld [vmem:[#allocation7 + $0x148] sm:$0xff]
    %v647 = vld [vmem:[#allocation7 + $0x150] sm:$0xff]
    %v648 = vld [vmem:[#allocation7 + $0x158] sm:$0xff]
    %v649 = vld [vmem:[#allocation7 + $0x160] sm:$0xff]
    %v650 = vld [vmem:[#allocation7 + $0x168] sm:$0xff]
    %v651 = vld [vmem:[#allocation7 + $0x170] sm:$0xff]
    %v652 = vld [vmem:[#allocation7 + $0x178] sm:$0xff]
    %v653 = vld [vmem:[#allocation7 + $0x180] sm:$0xff]
    %v654 = vld [vmem:[#allocation7 + $0x188] sm:$0xff]
    %v655 = vld [vmem:[#allocation7 + $0x190] sm:$0xff]
    %v656 = vld [vmem:[#allocation7 + $0x198] sm:$0xff]
    %v657 = vld [vmem:[#allocation7 + $0x1a0] sm:$0xff]
    %v658 = vld [vmem:[#allocation7 + $0x1a8] sm:$0xff]
    %v659 = vld [vmem:[#allocation7 + $0x1b0] sm:$0xff]
    %v660 = vld [vmem:[#allocation7 + $0x1b8] sm:$0xff]
    %v661 = vld [vmem:[#allocation7 + $0x1c0] sm:$0xff]
    %v662 = vld [vmem:[#allocation7 + $0x1c8] sm:$0xff]
    %v663 = vld [vmem:[#allocation7 + $0x1d0] sm:$0xff]
    %v664 = vld [vmem:[#allocation7 + $0x1d8] sm:$0xff]
    %v665 = vld [vmem:[#allocation7 + $0x1e0] sm:$0xff]
    %v666 = vld [vmem:[#allocation7 + $0x1e8] sm:$0xff]
    %v667 = vld [vmem:[#allocation7 + $0x1f0] sm:$0xff]
    %v668 = vld [vmem:[#allocation7 + $0x1f8] sm:$0xff]
    %669 = vmatprep.subr.mxu0 %v666
    %670 = vmatpush1.msra.mxu0 %v665
    %671 = vmatprep.subr.mxu0 %v662
    %672 = vmatpush1.msra.mxu0 %v661
    %673 = vmatprep.subr.mxu0 %v658
    %674 = vmatpush1.msra.mxu0 %v657
    %675 = vmatprep.subr.mxu0 %v654
    %676 = vmatpush1.msra.mxu0 %v653
    %677 = vmatprep.subr.mxu0 %v650
    %678 = vmatpush1.msra.mxu0 %v649
    %679 = vmatprep.subr.mxu0 %v646
    %680 = vmatpush1.msra.mxu0 %v645
    %681 = vmatprep.subr.mxu0 %v642
    %682 = vmatpush1.msra.mxu0 %v641
    %683 = vmatprep.subr.mxu0 %v638
    %684 = vmatpush1.msra.mxu0 %v637
    %685 = vmatprep.subr.mxu0 %v634
    %686 = vmatpush1.msra.mxu0 %v633
    %687 = vmatprep.subr.mxu0 %v630
    %688 = vmatpush1.msra.mxu0 %v629
    %689 = vmatprep.subr.mxu0 %v626
    %690 = vmatpush1.msra.mxu0 %v625
    %691 = vmatprep.subr.mxu0 %v622
    %692 = vmatpush1.msra.mxu0 %v621
    %693 = vmatprep.subr.mxu0 %v618
    %694 = vmatpush1.msra.mxu0 %v617
    %695 = vmatprep.subr.mxu0 %v614
    %696 = vmatpush1.msra.mxu0 %v613
    %697 = vmatprep.subr.mxu0 %v610
    %698 = vmatpush1.msra.mxu0 %v609
    %699 = vmatprep.subr.mxu0 %v606
    %700 = vmatpush1.msra.mxu0 %v605
    %701 = vmatprep.subr.mxu0 0.0
    %702 = vmatpush2.msra.mxu0 0.0
    %703 = vmatprep.subr.mxu0 0.0
    %704 = vmatpush2.msra.mxu0 0.0
    %705 = vmatprep.subr.mxu0 0.0
    %706 = vmatpush2.msra.mxu0 0.0
    %707 = vmatprep.subr.mxu0 0.0
    %708 = vmatpush2.msra.mxu0 0.0
    %709 = vmatprep.subr.mxu0 0.0
    %710 = vmatpush2.msra.mxu0 0.0
    %711 = vmatprep.subr.mxu0 0.0
    %712 = vmatpush2.msra.mxu0 0.0
    %713 = vmatprep.subr.mxu0 0.0
    %714 = vmatpush2.msra.mxu0 0.0
    %715 = vmatprep.subr.mxu0 0.0
    %716 = vmatpush2.msra.mxu0 0.0
    %717 = vmatprep.subr.mxu0 0.0
    %718 = vmatpush2.msra.mxu0 0.0
    %719 = vmatprep.subr.mxu0 0.0
    %720 = vmatpush2.msra.mxu0 0.0
    %721 = vmatprep.subr.mxu0 0.0
    %722 = vmatpush2.msra.mxu0 0.0
    %723 = vmatprep.subr.mxu0 0.0
    %724 = vmatpush2.msra.mxu0 0.0
    %725 = vmatprep.subr.mxu0 0.0
    %726 = vmatpush2.msra.mxu0 0.0
    %727 = vmatprep.subr.mxu0 0.0
    %728 = vmatpush2.msra.mxu0 0.0
    %729 = vmatprep.subr.mxu0 0.0
    %730 = vmatpush2.msra.mxu0 0.0
    %731 = vmatprep.subr.mxu0 0.0
    %732 = vmatpush2.msra.mxu0 0.0
    %733 = vmatprep.mubr.f32.mxu0 0.0
    %734 = vmatmul.mubr.f32.gmra.mxu0 0.0
    %v735 = vpop.f32.mrf.mxu0
    %v736 = vadd.f32 0.0, %v735
    %v737 = vpop.f32.mrf.mxu0
    %v738 = vadd.f32 0.0, %v737
    %739 = vdwg.mxu0
    %740 = vmatprep.subr.mxu0 %v668
    %741 = vmatpush1.msra.mxu0 %v667
    %742 = vmatprep.subr.mxu0 %v664
    %743 = vmatpush1.msra.mxu0 %v663
    %744 = vmatprep.subr.mxu0 %v660
    %745 = vmatpush1.msra.mxu0 %v659
    %746 = vmatprep.subr.mxu0 %v656
    %747 = vmatpush1.msra.mxu0 %v655
    %748 = vmatprep.subr.mxu0 %v652
    %749 = vmatpush1.msra.mxu0 %v651
    %750 = vmatprep.subr.mxu0 %v648
    %751 = vmatpush1.msra.mxu0 %v647
    %752 = vmatprep.subr.mxu0 %v644
    %753 = vmatpush1.msra.mxu0 %v643
    %754 = vmatprep.subr.mxu0 %v640
    %755 = vmatpush1.msra.mxu0 %v639
    %756 = vmatprep.subr.mxu0 %v636
    %757 = vmatpush1.msra.mxu0 %v635
    %758 = vmatprep.subr.mxu0 %v632
    %759 = vmatpush1.msra.mxu0 %v631
    %760 = vmatprep.subr.mxu0 %v628
    %761 = vmatpush1.msra.mxu0 %v627
    %762 = vmatprep.subr.mxu0 %v624
    %763 = vmatpush1.msra.mxu0 %v623
    %764 = vmatprep.subr.mxu0 %v620
    %765 = vmatpush1.msra.mxu0 %v619
    %766 = vmatprep.subr.mxu0 %v616
    %767 = vmatpush1.msra.mxu0 %v615
    %768 = vmatprep.subr.mxu0 %v612
    %769 = vmatpush1.msra.mxu0 %v611
    %770 = vmatprep.subr.mxu0 %v608
    %771 = vmatpush1.msra.mxu0 %v607
    %772 = vmatprep.subr.mxu0 0.0
    %773 = vmatpush2.msra.mxu0 0.0
    %774 = vmatprep.subr.mxu0 0.0
    %775 = vmatpush2.msra.mxu0 0.0
    %776 = vmatprep.subr.mxu0 0.0
    %777 = vmatpush2.msra.mxu0 0.0
    %778 = vmatprep.subr.mxu0 0.0
    %779 = vmatpush2.msra.mxu0 0.0
    %780 = vmatprep.subr.mxu0 0.0
    %781 = vmatpush2.msra.mxu0 0.0
    %782 = vmatprep.subr.mxu0 0.0
    %783 = vmatpush2.msra.mxu0 0.0
    %784 = vmatprep.subr.mxu0 0.0
    %785 = vmatpush2.msra.mxu0 0.0
    %786 = vmatprep.subr.mxu0 0.0
    %787 = vmatpush2.msra.mxu0 0.0
    %788 = vmatprep.subr.mxu0 0.0
    %789 = vmatpush2.msra.mxu0 0.0
    %790 = vmatprep.subr.mxu0 0.0
    %791 = vmatpush2.msra.mxu0 0.0
    %792 = vmatprep.subr.mxu0 0.0
    %793 = vmatpush2.msra.mxu0 0.0
    %794 = vmatprep.subr.mxu0 0.0
    %795 = vmatpush2.msra.mxu0 0.0
    %796 = vmatprep.subr.mxu0 0.0
    %797 = vmatpush2.msra.mxu0 0.0
    %798 = vmatprep.subr.mxu0 0.0
    %799 = vmatpush2.msra.mxu0 0.0
    %800 = vmatprep.subr.mxu0 0.0
    %801 = vmatpush2.msra.mxu0 0.0
    %802 = vmatprep.subr.mxu0 0.0
    %803 = vmatpush2.msra.mxu0 0.0
    %804 = vmatprep.mubr.f32.mxu0 0.0
    %805 = vmatmul.mubr.f32.gmra.mxu0 0.0
    %v806 = vpop.f32.mrf.mxu0
    %v807 = vadd.f32 0.0, %v806
    %v808 = vpop.f32.mrf.mxu0
    %v809 = vadd.f32 0.0, %v808
    %810 = vdwg.mxu0
    %v815 = vrot.slane %v736, 1
    %v816 = vrot.slane %v738, 1
    %v817 = vrot.slane %v807, 1
    %v818 = vrot.slane %v809, 1
    %v827 = vadd.f32 %v518, %v736
    %v828 = vadd.f32 %v520, %v738
    %v829 = vadd.f32 %v595, %v807
    %v830 = vadd.f32 %v597, %v809
    %v831 = vadd.f32 %v524, %v815
    %v832 = vadd.f32 %v526, %v816
    %v833 = vadd.f32 %v601, %v817
    %v834 = vadd.f32 %v603, %v818
    %v835 = vxor.u32 %v827, 2147483648
    %v836 = vxor.u32 %v831, 2147483648
    %v837 = vmul.f32 %v835, 1.442695
    %v838 = vpow.pop %v837
    %v839 = vmul.f32 %v836, 1.442695
    %v840 = vpow.pop %v839
    %v841 = vadd.f32 %v838, 1.0
    %v842 = vadd.f32 %v840, 1.0
    %v843 = vrcp.pop %v841
    %v844 = vmul.f32 1.0, %v843
    %v845 = vrcp.pop %v842
    %v846 = vmul.f32 1.0, %v845
    %v847 = vxor.u32 %v828, 2147483648
    %v848 = vxor.u32 %v832, 2147483648
    %v849 = vmul.f32 %v847, 1.442695
    %v850 = vpow.pop %v849
    %v851 = vmul.f32 %v848, 1.442695
    %v852 = vpow.pop %v851
    %v853 = vadd.f32 %v850, 1.0
    %v854 = vadd.f32 %v852, 1.0
    %v855 = vrcp.pop %v853
    %v856 = vmul.f32 1.0, %v855
    %v857 = vrcp.pop %v854
    %v858 = vmul.f32 1.0, %v857
    %v859 = vtanh.pop %v829
    %v860 = vtanh.pop %v833
    %v861 = vxor.u32 %v830, 2147483648
    %v862 = vxor.u32 %v834, 2147483648
    %v863 = vmul.f32 %v861, 1.442695
    %v864 = vpow.pop %v863
    %v865 = vmul.f32 %v862, 1.442695
    %v866 = vpow.pop %v865
    %v867 = vadd.f32 %v864, 1.0
    %v868 = vadd.f32 %v866, 1.0
    %v869 = vrcp.pop %v867
    %v870 = vmul.f32 1.0, %v869
    %v871 = vrcp.pop %v868
    %v872 = vmul.f32 1.0, %v871
    %v873 = vmul.f32 %v856, 0.0
    %v874 = vmul.f32 %v858, 0.0
    %v875 = vmul.f32 %v844, %v859
    %v876 = vmul.f32 %v846, %v860
    %v877 = vadd.f32 %v873, %v875
    %v878 = vadd.f32 %v874, %v876
    %v879 = vtanh.pop %v877
    %v880 = vtanh.pop %v878
    %v881 = vmul.f32 %v870, %v879
    %v882 = vmul.f32 %v872, %v880
    %v885 = vrot.slane %v882, 7
    %vm886 = vcmask 1041409
    %v887 = vsel %vm886, %v885, %v881
    %889 = vmatprep.subr.mxu0 %v666
    %890 = vmatpush1.msra.mxu0 %v665
    %891 = vmatprep.subr.mxu0 %v662
    %892 = vmatpush1.msra.mxu0 %v661
    %893 = vmatprep.subr.mxu0 %v658
    %894 = vmatpush1.msra.mxu0 %v657
    %895 = vmatprep.subr.mxu0 %v654
    %896 = vmatpush1.msra.mxu0 %v653
    %897 = vmatprep.subr.mxu0 %v650
    %898 = vmatpush1.msra.mxu0 %v649
    %899 = vmatprep.subr.mxu0 %v646
    %900 = vmatpush1.msra.mxu0 %v645
    %901 = vmatprep.subr.mxu0 %v642
    %902 = vmatpush1.msra.mxu0 %v641
    %903 = vmatprep.subr.mxu0 %v638
    %904 = vmatpush1.msra.mxu0 %v637
    %905 = vmatprep.subr.mxu0 %v634
    %906 = vmatpush1.msra.mxu0 %v633
    %907 = vmatprep.subr.mxu0 %v630
    %908 = vmatpush1.msra.mxu0 %v629
    %909 = vmatprep.subr.mxu0 %v626
    %910 = vmatpush1.msra.mxu0 %v625
    %911 = vmatprep.subr.mxu0 %v622
    %912 = vmatpush1.msra.mxu0 %v621
    %913 = vmatprep.subr.mxu0 %v618
    %914 = vmatpush1.msra.mxu0 %v617
    %915 = vmatprep.subr.mxu0 %v614
    %916 = vmatpush1.msra.mxu0 %v613
    %917 = vmatprep.subr.mxu0 %v610
    %918 = vmatpush1.msra.mxu0 %v609
    %919 = vmatprep.subr.mxu0 %v606
    %920 = vmatpush1.msra.mxu0 %v605
    %921 = vmatprep.subr.mxu0 0.0
    %922 = vmatpush2.msra.mxu0 0.0
    %923 = vmatprep.subr.mxu0 0.0
    %924 = vmatpush2.msra.mxu0 0.0
    %925 = vmatprep.subr.mxu0 0.0
    %926 = vmatpush2.msra.mxu0 0.0
    %927 = vmatprep.subr.mxu0 0.0
    %928 = vmatpush2.msra.mxu0 0.0
    %929 = vmatprep.subr.mxu0 0.0
    %930 = vmatpush2.msra.mxu0 0.0
    %931 = vmatprep.subr.mxu0 0.0
    %932 = vmatpush2.msra.mxu0 0.0
    %933 = vmatprep.subr.mxu0 0.0
    %934 = vmatpush2.msra.mxu0 0.0
    %935 = vmatprep.subr.mxu0 0.0
    %936 = vmatpush2.msra.mxu0 0.0
    %937 = vmatprep.subr.mxu0 0.0
    %938 = vmatpush2.msra.mxu0 0.0
    %939 = vmatprep.subr.mxu0 0.0
    %940 = vmatpush2.msra.mxu0 0.0
    %941 = vmatprep.subr.mxu0 0.0
    %942 = vmatpush2.msra.mxu0 0.0
    %943 = vmatprep.subr.mxu0 0.0
    %944 = vmatpush2.msra.mxu0 0.0
    %945 = vmatprep.subr.mxu0 0.0
    %946 = vmatpush2.msra.mxu0 0.0
    %947 = vmatprep.subr.mxu0 0.0
    %948 = vmatpush2.msra.mxu0 0.0
    %949 = vmatprep.subr.mxu0 0.0
    %950 = vmatpush2.msra.mxu0 0.0
    %951 = vmatprep.subr.mxu0 0.0
    %952 = vmatpush2.msra.mxu0 0.0
    %953 = vmatprep.mubr.f32.mxu0 0.0
    %954 = vmatmul.mubr.f32.gmra.mxu0 %v887
    %v955 = vpop.f32.mrf.mxu0
    %v956 = vadd.f32 0.0, %v955
    %v957 = vpop.f32.mrf.mxu0
    %v958 = vadd.f32 0.0, %v957
    %959 = vdwg.mxu0
    %960 = vmatprep.subr.mxu0 %v668
    %961 = vmatpush1.msra.mxu0 %v667
    %962 = vmatprep.subr.mxu0 %v664
    %963 = vmatpush1.msra.mxu0 %v663
    %964 = vmatprep.subr.mxu0 %v660
    %965 = vmatpush1.msra.mxu0 %v659
    %966 = vmatprep.subr.mxu0 %v656
    %967 = vmatpush1.msra.mxu0 %v655
    %968 = vmatprep.subr.mxu0 %v652
    %969 = vmatpush1.msra.mxu0 %v651
    %970 = vmatprep.subr.mxu0 %v648
    %971 = vmatpush1.msra.mxu0 %v647
    %972 = vmatprep.subr.mxu0 %v644
    %973 = vmatpush1.msra.mxu0 %v643
    %974 = vmatprep.subr.mxu0 %v640
    %975 = vmatpush1.msra.mxu0 %v639
    %976 = vmatprep.subr.mxu0 %v636
    %977 = vmatpush1.msra.mxu0 %v635
    %978 = vmatprep.subr.mxu0 %v632
    %979 = vmatpush1.msra.mxu0 %v631
    %980 = vmatprep.subr.mxu0 %v628
    %981 = vmatpush1.msra.mxu0 %v627
    %982 = vmatprep.subr.mxu0 %v624
    %983 = vmatpush1.msra.mxu0 %v623
    %984 = vmatprep.subr.mxu0 %v620
    %985 = vmatpush1.msra.mxu0 %v619
    %986 = vmatprep.subr.mxu0 %v616
    %987 = vmatpush1.msra.mxu0 %v615
    %988 = vmatprep.subr.mxu0 %v612
    %989 = vmatpush1.msra.mxu0 %v611
    %990 = vmatprep.subr.mxu0 %v608
    %991 = vmatpush1.msra.mxu0 %v607
    %992 = vmatprep.subr.mxu0 0.0
    %993 = vmatpush2.msra.mxu0 0.0
    %994 = vmatprep.subr.mxu0 0.0
    %995 = vmatpush2.msra.mxu0 0.0
    %996 = vmatprep.subr.mxu0 0.0
    %997 = vmatpush2.msra.mxu0 0.0
    %998 = vmatprep.subr.mxu0 0.0
    %999 = vmatpush2.msra.mxu0 0.0
    %1000 = vmatprep.subr.mxu0 0.0
    %1001 = vmatpush2.msra.mxu0 0.0
    %1002 = vmatprep.subr.mxu0 0.0
    %1003 = vmatpush2.msra.mxu0 0.0
    %1004 = vmatprep.subr.mxu0 0.0
    %1005 = vmatpush2.msra.mxu0 0.0
    %1006 = vmatprep.subr.mxu0 0.0
    %1007 = vmatpush2.msra.mxu0 0.0
    %1008 = vmatprep.subr.mxu0 0.0
    %1009 = vmatpush2.msra.mxu0 0.0
    %1010 = vmatprep.subr.mxu0 0.0
    %1011 = vmatpush2.msra.mxu0 0.0
    %1012 = vmatprep.subr.mxu0 0.0
    %1013 = vmatpush2.msra.mxu0 0.0
    %1014 = vmatprep.subr.mxu0 0.0
    %1015 = vmatpush2.msra.mxu0 0.0
    %1016 = vmatprep.subr.mxu0 0.0
    %1017 = vmatpush2.msra.mxu0 0.0
    %1018 = vmatprep.subr.mxu0 0.0
    %1019 = vmatpush2.msra.mxu0 0.0
    %1020 = vmatprep.subr.mxu0 0.0
    %1021 = vmatpush2.msra.mxu0 0.0
    %1022 = vmatprep.subr.mxu0 0.0
    %1023 = vmatpush2.msra.mxu0 0.0
    %1024 = vmatprep.mubr.f32.mxu0 0.0
    %1025 = vmatmul.mubr.f32.gmra.mxu0 %v887
    %v1026 = vpop.f32.mrf.mxu0
    %v1027 = vadd.f32 0.0, %v1026
    %v1028 = vpop.f32.mrf.mxu0
    %v1029 = vadd.f32 0.0, %v1028
    %1030 = vdwg.mxu0
    %v1035 = vrot.slane %v956, 7
    %v1036 = vrot.slane %v958, 7
    %v1037 = vrot.slane %v1027, 7
    %v1038 = vrot.slane %v1029, 7
    %v1047 = vadd.f32 %v518, %v1035
    %v1048 = vadd.f32 %v520, %v1036
    %v1049 = vadd.f32 %v595, %v1037
    %v1050 = vadd.f32 %v597, %v1038
    %v1051 = vadd.f32 %v524, %v956
    %v1052 = vadd.f32 %v526, %v958
    %v1053 = vadd.f32 %v601, %v1027
    %v1054 = vadd.f32 %v603, %v1029
    %v1055 = vxor.u32 %v1047, 2147483648
    %v1056 = vxor.u32 %v1051, 2147483648
    %v1057 = vmul.f32 %v1055, 1.442695
    %v1058 = vpow.pop %v1057
    %v1059 = vmul.f32 %v1056, 1.442695
    %v1060 = vpow.pop %v1059
    %v1061 = vadd.f32 %v1058, 1.0
    %v1062 = vadd.f32 %v1060, 1.0
    %v1063 = vrcp.pop %v1061
    %v1064 = vmul.f32 1.0, %v1063
    %v1065 = vrcp.pop %v1062
    %v1066 = vmul.f32 1.0, %v1065
    %v1067 = vxor.u32 %v1048, 2147483648
    %v1068 = vxor.u32 %v1052, 2147483648
    %v1069 = vmul.f32 %v1067, 1.442695
    %v1070 = vpow.pop %v1069
    %v1071 = vmul.f32 %v1068, 1.442695
    %v1072 = vpow.pop %v1071
    %v1073 = vadd.f32 %v1070, 1.0
    %v1074 = vadd.f32 %v1072, 1.0
    %v1075 = vrcp.pop %v1073
    %v1076 = vmul.f32 1.0, %v1075
    %v1077 = vrcp.pop %v1074
    %v1078 = vmul.f32 1.0, %v1077
    %v1079 = vtanh.pop %v1049
    %v1080 = vtanh.pop %v1053
    %v1081 = vxor.u32 %v1050, 2147483648
    %v1082 = vxor.u32 %v1054, 2147483648
    %v1083 = vmul.f32 %v1081, 1.442695
    %v1084 = vpow.pop %v1083
    %v1085 = vmul.f32 %v1082, 1.442695
    %v1086 = vpow.pop %v1085
    %v1087 = vadd.f32 %v1084, 1.0
    %v1088 = vadd.f32 %v1086, 1.0
    %v1089 = vrcp.pop %v1087
    %v1090 = vmul.f32 1.0, %v1089
    %v1091 = vrcp.pop %v1088
    %v1092 = vmul.f32 1.0, %v1091
    %v1095 = vrot.slane %v877, 7
    %v1096 = vrot.slane %v878, 7
    %v1099 = vmul.f32 %v1076, %v1095
    %v1100 = vmul.f32 %v1078, %v1096
    %v1101 = vmul.f32 %v1064, %v1079
    %v1102 = vmul.f32 %v1066, %v1080
    %v1103 = vadd.f32 %v1099, %v1101
    %v1104 = vadd.f32 %v1100, %v1102
    %v1105 = vtanh.pop %v1103
    %v1106 = vtanh.pop %v1104
    %v1107 = vmul.f32 %v1090, %v1105
    %v1108 = vmul.f32 %v1092, %v1106
    %v1111 = vrot.slane %v1107, 1
    %v1112 = vsel %vm886, %v1108, %v1111
    %1114 = vmatprep.subr.mxu0 %v666
    %1115 = vmatpush1.msra.mxu0 %v665
    %1116 = vmatprep.subr.mxu0 %v662
    %1117 = vmatpush1.msra.mxu0 %v661
    %1118 = vmatprep.subr.mxu0 %v658
    %1119 = vmatpush1.msra.mxu0 %v657
    %1120 = vmatprep.subr.mxu0 %v654
    %1121 = vmatpush1.msra.mxu0 %v653
    %1122 = vmatprep.subr.mxu0 %v650
    %1123 = vmatpush1.msra.mxu0 %v649
    %1124 = vmatprep.subr.mxu0 %v646
    %1125 = vmatpush1.msra.mxu0 %v645
    %1126 = vmatprep.subr.mxu0 %v642
    %1127 = vmatpush1.msra.mxu0 %v641
    %1128 = vmatprep.subr.mxu0 %v638
    %1129 = vmatpush1.msra.mxu0 %v637
    %1130 = vmatprep.subr.mxu0 %v634
    %1131 = vmatpush1.msra.mxu0 %v633
    %1132 = vmatprep.subr.mxu0 %v630
    %1133 = vmatpush1.msra.mxu0 %v629
    %1134 = vmatprep.subr.mxu0 %v626
    %1135 = vmatpush1.msra.mxu0 %v625
    %1136 = vmatprep.subr.mxu0 %v622
    %1137 = vmatpush1.msra.mxu0 %v621
    %1138 = vmatprep.subr.mxu0 %v618
    %1139 = vmatpush1.msra.mxu0 %v617
    %1140 = vmatprep.subr.mxu0 %v614
    %1141 = vmatpush1.msra.mxu0 %v613
    %1142 = vmatprep.subr.mxu0 %v610
    %1143 = vmatpush1.msra.mxu0 %v609
    %1144 = vmatprep.subr.mxu0 %v606
    %1145 = vmatpush1.msra.mxu0 %v605
    %1146 = vmatprep.subr.mxu0 0.0
    %1147 = vmatpush2.msra.mxu0 0.0
    %1148 = vmatprep.subr.mxu0 0.0
    %1149 = vmatpush2.msra.mxu0 0.0
    %1150 = vmatprep.subr.mxu0 0.0
    %1151 = vmatpush2.msra.mxu0 0.0
    %1152 = vmatprep.subr.mxu0 0.0
    %1153 = vmatpush2.msra.mxu0 0.0
    %1154 = vmatprep.subr.mxu0 0.0
    %1155 = vmatpush2.msra.mxu0 0.0
    %1156 = vmatprep.subr.mxu0 0.0
    %1157 = vmatpush2.msra.mxu0 0.0
    %1158 = vmatprep.subr.mxu0 0.0
    %1159 = vmatpush2.msra.mxu0 0.0
    %1160 = vmatprep.subr.mxu0 0.0
    %1161 = vmatpush2.msra.mxu0 0.0
    %1162 = vmatprep.subr.mxu0 0.0
    %1163 = vmatpush2.msra.mxu0 0.0
    %1164 = vmatprep.subr.mxu0 0.0
    %1165 = vmatpush2.msra.mxu0 0.0
    %1166 = vmatprep.subr.mxu0 0.0
    %1167 = vmatpush2.msra.mxu0 0.0
    %1168 = vmatprep.subr.mxu0 0.0
    %1169 = vmatpush2.msra.mxu0 0.0
    %1170 = vmatprep.subr.mxu0 0.0
    %1171 = vmatpush2.msra.mxu0 0.0
    %1172 = vmatprep.subr.mxu0 0.0
    %1173 = vmatpush2.msra.mxu0 0.0
    %1174 = vmatprep.subr.mxu0 0.0
    %1175 = vmatpush2.msra.mxu0 0.0
    %1176 = vmatprep.subr.mxu0 0.0
    %1177 = vmatpush2.msra.mxu0 0.0
    %1178 = vmatprep.mubr.f32.mxu0 0.0
    %1179 = vmatmul.mubr.f32.gmra.mxu0 %v1112
    %v1180 = vpop.f32.mrf.mxu0
    %v1181 = vadd.f32 0.0, %v1180
    %v1182 = vpop.f32.mrf.mxu0
    %v1183 = vadd.f32 0.0, %v1182
    %1184 = vdwg.mxu0
    %1185 = vmatprep.subr.mxu0 %v668
    %1186 = vmatpush1.msra.mxu0 %v667
    %1187 = vmatprep.subr.mxu0 %v664
    %1188 = vmatpush1.msra.mxu0 %v663
    %1189 = vmatprep.subr.mxu0 %v660
    %1190 = vmatpush1.msra.mxu0 %v659
    %1191 = vmatprep.subr.mxu0 %v656
    %1192 = vmatpush1.msra.mxu0 %v655
    %1193 = vmatprep.subr.mxu0 %v652
    %1194 = vmatpush1.msra.mxu0 %v651
    %1195 = vmatprep.subr.mxu0 %v648
    %1196 = vmatpush1.msra.mxu0 %v647
    %1197 = vmatprep.subr.mxu0 %v644
    %1198 = vmatpush1.msra.mxu0 %v643
    %1199 = vmatprep.subr.mxu0 %v640
    %1200 = vmatpush1.msra.mxu0 %v639
    %1201 = vmatprep.subr.mxu0 %v636
    %1202 = vmatpush1.msra.mxu0 %v635
    %1203 = vmatprep.subr.mxu0 %v632
    %1204 = vmatpush1.msra.mxu0 %v631
    %1205 = vmatprep.subr.mxu0 %v628
    %1206 = vmatpush1.msra.mxu0 %v627
    %1207 = vmatprep.subr.mxu0 %v624
    %1208 = vmatpush1.msra.mxu0 %v623
    %1209 = vmatprep.subr.mxu0 %v620
    %1210 = vmatpush1.msra.mxu0 %v619
    %1211 = vmatprep.subr.mxu0 %v616
    %1212 = vmatpush1.msra.mxu0 %v615
    %1213 = vmatprep.subr.mxu0 %v612
    %1214 = vmatpush1.msra.mxu0 %v611
    %1215 = vmatprep.subr.mxu0 %v608
    %1216 = vmatpush1.msra.mxu0 %v607
    %1217 = vmatprep.subr.mxu0 0.0
    %1218 = vmatpush2.msra.mxu0 0.0
    %1219 = vmatprep.subr.mxu0 0.0
    %1220 = vmatpush2.msra.mxu0 0.0
    %1221 = vmatprep.subr.mxu0 0.0
    %1222 = vmatpush2.msra.mxu0 0.0
    %1223 = vmatprep.subr.mxu0 0.0
    %1224 = vmatpush2.msra.mxu0 0.0
    %1225 = vmatprep.subr.mxu0 0.0
    %1226 = vmatpush2.msra.mxu0 0.0
    %1227 = vmatprep.subr.mxu0 0.0
    %1228 = vmatpush2.msra.mxu0 0.0
    %1229 = vmatprep.subr.mxu0 0.0
    %1230 = vmatpush2.msra.mxu0 0.0
    %1231 = vmatprep.subr.mxu0 0.0
    %1232 = vmatpush2.msra.mxu0 0.0
    %1233 = vmatprep.subr.mxu0 0.0
    %1234 = vmatpush2.msra.mxu0 0.0
    %1235 = vmatprep.subr.mxu0 0.0
    %1236 = vmatpush2.msra.mxu0 0.0
    %1237 = vmatprep.subr.mxu0 0.0
    %1238 = vmatpush2.msra.mxu0 0.0
    %1239 = vmatprep.subr.mxu0 0.0
    %1240 = vmatpush2.msra.mxu0 0.0
    %1241 = vmatprep.subr.mxu0 0.0
    %1242 = vmatpush2.msra.mxu0 0.0
    %1243 = vmatprep.subr.mxu0 0.0
    %1244 = vmatpush2.msra.mxu0 0.0
    %1245 = vmatprep.subr.mxu0 0.0
    %1246 = vmatpush2.msra.mxu0 0.0
    %1247 = vmatprep.subr.mxu0 0.0
    %1248 = vmatpush2.msra.mxu0 0.0
    %1249 = vmatprep.mubr.f32.mxu0 0.0
    %1250 = vmatmul.mubr.f32.gmra.mxu0 %v1112
    %v1251 = vpop.f32.mrf.mxu0
    %v1252 = vadd.f32 0.0, %v1251
    %v1253 = vpop.f32.mrf.mxu0
    %v1254 = vadd.f32 0.0, %v1253
    %1255 = vdwg.mxu0
    %v1260 = vrot.slane %v1181, 6
    %v1261 = vrot.slane %v1183, 6
    %v1262 = vrot.slane %v1252, 6
    %v1263 = vrot.slane %v1254, 6
    %v1264 = vrot.slane %v1181, 7
    %v1265 = vrot.slane %v1183, 7
    %v1266 = vrot.slane %v1252, 7
    %v1267 = vrot.slane %v1254, 7
    %v1276 = vadd.f32 %v518, %v1260
    %v1277 = vadd.f32 %v520, %v1261
    %v1278 = vadd.f32 %v595, %v1262
    %v1279 = vadd.f32 %v597, %v1263
    %v1280 = vadd.f32 %v524, %v1264
    %v1281 = vadd.f32 %v526, %v1265
    %v1282 = vadd.f32 %v601, %v1266
    %v1283 = vadd.f32 %v603, %v1267
    %v1284 = vxor.u32 %v1276, 2147483648
    %v1285 = vxor.u32 %v1280, 2147483648
    %v1286 = vmul.f32 %v1284, 1.442695
    %v1287 = vpow.pop %v1286
    %v1288 = vmul.f32 %v1285, 1.442695
    %v1289 = vpow.pop %v1288
    %v1290 = vadd.f32 %v1287, 1.0
    %v1291 = vadd.f32 %v1289, 1.0
    %v1292 = vrcp.pop %v1290
    %v1293 = vmul.f32 1.0, %v1292
    %v1294 = vrcp.pop %v1291
    %v1295 = vmul.f32 1.0, %v1294
    %v1296 = vxor.u32 %v1277, 2147483648
    %v1297 = vxor.u32 %v1281, 2147483648
    %v1298 = vmul.f32 %v1296, 1.442695
    %v1299 = vpow.pop %v1298
    %v1300 = vmul.f32 %v1297, 1.442695
    %v1301 = vpow.pop %v1300
    %v1302 = vadd.f32 %v1299, 1.0
    %v1303 = vadd.f32 %v1301, 1.0
    %v1304 = vrcp.pop %v1302
    %v1305 = vmul.f32 1.0, %v1304
    %v1306 = vrcp.pop %v1303
    %v1307 = vmul.f32 1.0, %v1306
    %v1308 = vtanh.pop %v1278
    %v1309 = vtanh.pop %v1282
    %v1310 = vxor.u32 %v1279, 2147483648
    %v1311 = vxor.u32 %v1283, 2147483648
    %v1312 = vmul.f32 %v1310, 1.442695
    %v1313 = vpow.pop %v1312
    %v1314 = vmul.f32 %v1311, 1.442695
    %v1315 = vpow.pop %v1314
    %v1316 = vadd.f32 %v1313, 1.0
    %v1317 = vadd.f32 %v1315, 1.0
    %v1318 = vrcp.pop %v1316
    %v1319 = vmul.f32 1.0, %v1318
    %v1320 = vrcp.pop %v1317
    %v1321 = vmul.f32 1.0, %v1320
    %v1324 = vrot.slane %v1103, 7
    %v1325 = vrot.slane %v1104, 7
    %v1328 = vmul.f32 %v1305, %v1324
    %v1329 = vmul.f32 %v1307, %v1325
    %v1330 = vmul.f32 %v1293, %v1308
    %v1331 = vmul.f32 %v1295, %v1309
    %v1332 = vadd.f32 %v1328, %v1330
    %v1333 = vadd.f32 %v1329, %v1331
    %v1334 = vtanh.pop %v1332
    %v1335 = vtanh.pop %v1333
    %v1336 = vmul.f32 %v1319, %v1334
    %v1337 = vmul.f32 %v1321, %v1335
    %v1340 = vrot.slane %v1336, 2
    %v1341 = vrot.slane %v1337, 1
    %v1342 = vsel %vm886, %v1341, %v1340
    %1344 = vmatprep.subr.mxu0 %v666
    %1345 = vmatpush1.msra.mxu0 %v665
    %1346 = vmatprep.subr.mxu0 %v662
    %1347 = vmatpush1.msra.mxu0 %v661
    %1348 = vmatprep.subr.mxu0 %v658
    %1349 = vmatpush1.msra.mxu0 %v657
    %1350 = vmatprep.subr.mxu0 %v654
    %1351 = vmatpush1.msra.mxu0 %v653
    %1352 = vmatprep.subr.mxu0 %v650
    %1353 = vmatpush1.msra.mxu0 %v649
    %1354 = vmatprep.subr.mxu0 %v646
    %1355 = vmatpush1.msra.mxu0 %v645
    %1356 = vmatprep.subr.mxu0 %v642
    %1357 = vmatpush1.msra.mxu0 %v641
    %1358 = vmatprep.subr.mxu0 %v638
    %1359 = vmatpush1.msra.mxu0 %v637
    %1360 = vmatprep.subr.mxu0 %v634
    %1361 = vmatpush1.msra.mxu0 %v633
    %1362 = vmatprep.subr.mxu0 %v630
    %1363 = vmatpush1.msra.mxu0 %v629
    %1364 = vmatprep.subr.mxu0 %v626
    %1365 = vmatpush1.msra.mxu0 %v625
    %1366 = vmatprep.subr.mxu0 %v622
    %1367 = vmatpush1.msra.mxu0 %v621
    %1368 = vmatprep.subr.mxu0 %v618
    %1369 = vmatpush1.msra.mxu0 %v617
    %1370 = vmatprep.subr.mxu0 %v614
    %1371 = vmatpush1.msra.mxu0 %v613
    %1372 = vmatprep.subr.mxu0 %v610
    %1373 = vmatpush1.msra.mxu0 %v609
    %1374 = vmatprep.subr.mxu0 %v606
    %1375 = vmatpush1.msra.mxu0 %v605
    %1376 = vmatprep.subr.mxu0 0.0
    %1377 = vmatpush2.msra.mxu0 0.0
    %1378 = vmatprep.subr.mxu0 0.0
    %1379 = vmatpush2.msra.mxu0 0.0
    %1380 = vmatprep.subr.mxu0 0.0
    %1381 = vmatpush2.msra.mxu0 0.0
    %1382 = vmatprep.subr.mxu0 0.0
    %1383 = vmatpush2.msra.mxu0 0.0
    %1384 = vmatprep.subr.mxu0 0.0
    %1385 = vmatpush2.msra.mxu0 0.0
    %1386 = vmatprep.subr.mxu0 0.0
    %1387 = vmatpush2.msra.mxu0 0.0
    %1388 = vmatprep.subr.mxu0 0.0
    %1389 = vmatpush2.msra.mxu0 0.0
    %1390 = vmatprep.subr.mxu0 0.0
    %1391 = vmatpush2.msra.mxu0 0.0
    %1392 = vmatprep.subr.mxu0 0.0
    %1393 = vmatpush2.msra.mxu0 0.0
    %1394 = vmatprep.subr.mxu0 0.0
    %1395 = vmatpush2.msra.mxu0 0.0
    %1396 = vmatprep.subr.mxu0 0.0
    %1397 = vmatpush2.msra.mxu0 0.0
    %1398 = vmatprep.subr.mxu0 0.0
    %1399 = vmatpush2.msra.mxu0 0.0
    %1400 = vmatprep.subr.mxu0 0.0
    %1401 = vmatpush2.msra.mxu0 0.0
    %1402 = vmatprep.subr.mxu0 0.0
    %1403 = vmatpush2.msra.mxu0 0.0
    %1404 = vmatprep.subr.mxu0 0.0
    %1405 = vmatpush2.msra.mxu0 0.0
    %1406 = vmatprep.subr.mxu0 0.0
    %1407 = vmatpush2.msra.mxu0 0.0
    %1408 = vmatprep.mubr.f32.mxu0 0.0
    %1409 = vmatmul.mubr.f32.gmra.mxu0 %v1342
    %v1410 = vpop.f32.mrf.mxu0
    %v1411 = vadd.f32 0.0, %v1410
    %v1412 = vpop.f32.mrf.mxu0
    %v1413 = vadd.f32 0.0, %v1412
    %1414 = vdwg.mxu0
    %1415 = vmatprep.subr.mxu0 %v668
    %1416 = vmatpush1.msra.mxu0 %v667
    %1417 = vmatprep.subr.mxu0 %v664
    %1418 = vmatpush1.msra.mxu0 %v663
    %1419 = vmatprep.subr.mxu0 %v660
    %1420 = vmatpush1.msra.mxu0 %v659
    %1421 = vmatprep.subr.mxu0 %v656
    %1422 = vmatpush1.msra.mxu0 %v655
    %1423 = vmatprep.subr.mxu0 %v652
    %1424 = vmatpush1.msra.mxu0 %v651
    %1425 = vmatprep.subr.mxu0 %v648
    %1426 = vmatpush1.msra.mxu0 %v647
    %1427 = vmatprep.subr.mxu0 %v644
    %1428 = vmatpush1.msra.mxu0 %v643
    %1429 = vmatprep.subr.mxu0 %v640
    %1430 = vmatpush1.msra.mxu0 %v639
    %1431 = vmatprep.subr.mxu0 %v636
    %1432 = vmatpush1.msra.mxu0 %v635
    %1433 = vmatprep.subr.mxu0 %v632
    %1434 = vmatpush1.msra.mxu0 %v631
    %1435 = vmatprep.subr.mxu0 %v628
    %1436 = vmatpush1.msra.mxu0 %v627
    %1437 = vmatprep.subr.mxu0 %v624
    %1438 = vmatpush1.msra.mxu0 %v623
    %1439 = vmatprep.subr.mxu0 %v620
    %1440 = vmatpush1.msra.mxu0 %v619
    %1441 = vmatprep.subr.mxu0 %v616
    %1442 = vmatpush1.msra.mxu0 %v615
    %1443 = vmatprep.subr.mxu0 %v612
    %1444 = vmatpush1.msra.mxu0 %v611
    %1445 = vmatprep.subr.mxu0 %v608
    %1446 = vmatpush1.msra.mxu0 %v607
    %1447 = vmatprep.subr.mxu0 0.0
    %1448 = vmatpush2.msra.mxu0 0.0
    %1449 = vmatprep.subr.mxu0 0.0
    %1450 = vmatpush2.msra.mxu0 0.0
    %1451 = vmatprep.subr.mxu0 0.0
    %1452 = vmatpush2.msra.mxu0 0.0
    %1453 = vmatprep.subr.mxu0 0.0
    %1454 = vmatpush2.msra.mxu0 0.0
    %1455 = vmatprep.subr.mxu0 0.0
    %1456 = vmatpush2.msra.mxu0 0.0
    %1457 = vmatprep.subr.mxu0 0.0
    %1458 = vmatpush2.msra.mxu0 0.0
    %1459 = vmatprep.subr.mxu0 0.0
    %1460 = vmatpush2.msra.mxu0 0.0
    %1461 = vmatprep.subr.mxu0 0.0
    %1462 = vmatpush2.msra.mxu0 0.0
    %1463 = vmatprep.subr.mxu0 0.0
    %1464 = vmatpush2.msra.mxu0 0.0
    %1465 = vmatprep.subr.mxu0 0.0
    %1466 = vmatpush2.msra.mxu0 0.0
    %1467 = vmatprep.subr.mxu0 0.0
    %1468 = vmatpush2.msra.mxu0 0.0
    %1469 = vmatprep.subr.mxu0 0.0
    %1470 = vmatpush2.msra.mxu0 0.0
    %1471 = vmatprep.subr.mxu0 0.0
    %1472 = vmatpush2.msra.mxu0 0.0
    %1473 = vmatprep.subr.mxu0 0.0
    %1474 = vmatpush2.msra.mxu0 0.0
    %1475 = vmatprep.subr.mxu0 0.0
    %1476 = vmatpush2.msra.mxu0 0.0
    %1477 = vmatprep.subr.mxu0 0.0
    %1478 = vmatpush2.msra.mxu0 0.0
    %1479 = vmatprep.mubr.f32.mxu0 0.0
    %1480 = vmatmul.mubr.f32.gmra.mxu0 %v1342
    %v1481 = vpop.f32.mrf.mxu0
    %v1482 = vadd.f32 0.0, %v1481
    %v1483 = vpop.f32.mrf.mxu0
    %v1484 = vadd.f32 0.0, %v1483
    %1485 = vdwg.mxu0
    %v1490 = vrot.slane %v1411, 5
    %v1491 = vrot.slane %v1413, 5
    %v1492 = vrot.slane %v1482, 5
    %v1493 = vrot.slane %v1484, 5
    %v1494 = vrot.slane %v1411, 6
    %v1495 = vrot.slane %v1413, 6
    %v1496 = vrot.slane %v1482, 6
    %v1497 = vrot.slane %v1484, 6
    %v1506 = vadd.f32 %v518, %v1490
    %v1507 = vadd.f32 %v520, %v1491
    %v1508 = vadd.f32 %v595, %v1492
    %v1509 = vadd.f32 %v597, %v1493
    %v1510 = vadd.f32 %v524, %v1494
    %v1511 = vadd.f32 %v526, %v1495
    %v1512 = vadd.f32 %v601, %v1496
    %v1513 = vadd.f32 %v603, %v1497
    %v1514 = vxor.u32 %v1506, 2147483648
    %v1515 = vxor.u32 %v1510, 2147483648
    %v1516 = vmul.f32 %v1514, 1.442695
    %v1517 = vpow.pop %v1516
    %v1518 = vmul.f32 %v1515, 1.442695
    %v1519 = vpow.pop %v1518
    %v1520 = vadd.f32 %v1517, 1.0
    %v1521 = vadd.f32 %v1519, 1.0
    %v1522 = vrcp.pop %v1520
    %v1523 = vmul.f32 1.0, %v1522
    %v1524 = vrcp.pop %v1521
    %v1525 = vmul.f32 1.0, %v1524
    %v1526 = vxor.u32 %v1507, 2147483648
    %v1527 = vxor.u32 %v1511, 2147483648
    %v1528 = vmul.f32 %v1526, 1.442695
    %v1529 = vpow.pop %v1528
    %v1530 = vmul.f32 %v1527, 1.442695
    %v1531 = vpow.pop %v1530
    %v1532 = vadd.f32 %v1529, 1.0
    %v1533 = vadd.f32 %v1531, 1.0
    %v1534 = vrcp.pop %v1532
    %v1535 = vmul.f32 1.0, %v1534
    %v1536 = vrcp.pop %v1533
    %v1537 = vmul.f32 1.0, %v1536
    %v1538 = vtanh.pop %v1508
    %v1539 = vtanh.pop %v1512
    %v1540 = vxor.u32 %v1509, 2147483648
    %v1541 = vxor.u32 %v1513, 2147483648
    %v1542 = vmul.f32 %v1540, 1.442695
    %v1543 = vpow.pop %v1542
    %v1544 = vmul.f32 %v1541, 1.442695
    %v1545 = vpow.pop %v1544
    %v1546 = vadd.f32 %v1543, 1.0
    %v1547 = vadd.f32 %v1545, 1.0
    %v1548 = vrcp.pop %v1546
    %v1549 = vmul.f32 1.0, %v1548
    %v1550 = vrcp.pop %v1547
    %v1551 = vmul.f32 1.0, %v1550
    %v1554 = vrot.slane %v1332, 7
    %v1555 = vrot.slane %v1333, 7
    %v1558 = vmul.f32 %v1535, %v1554
    %v1559 = vmul.f32 %v1537, %v1555
    %v1560 = vmul.f32 %v1523, %v1538
    %v1561 = vmul.f32 %v1525, %v1539
    %v1562 = vadd.f32 %v1558, %v1560
    %v1563 = vadd.f32 %v1559, %v1561
    %v1564 = vtanh.pop %v1562
    %v1565 = vtanh.pop %v1563
    %v1566 = vmul.f32 %v1549, %v1564
    %v1567 = vmul.f32 %v1551, %v1565
    %v1570 = vrot.slane %v1566, 3
    %v1571 = vrot.slane %v1567, 2
    %v1572 = vsel %vm886, %v1571, %v1570
    %1574 = vmatprep.subr.mxu0 %v666
    %1575 = vmatpush1.msra.mxu0 %v665
    %1576 = vmatprep.subr.mxu0 %v662
    %1577 = vmatpush1.msra.mxu0 %v661
    %1578 = vmatprep.subr.mxu0 %v658
    %1579 = vmatpush1.msra.mxu0 %v657
    %1580 = vmatprep.subr.mxu0 %v654
    %1581 = vmatpush1.msra.mxu0 %v653
    %1582 = vmatprep.subr.mxu0 %v650
    %1583 = vmatpush1.msra.mxu0 %v649
    %1584 = vmatprep.subr.mxu0 %v646
    %1585 = vmatpush1.msra.mxu0 %v645
    %1586 = vmatprep.subr.mxu0 %v642
    %1587 = vmatpush1.msra.mxu0 %v641
    %1588 = vmatprep.subr.mxu0 %v638
    %1589 = vmatpush1.msra.mxu0 %v637
    %1590 = vmatprep.subr.mxu0 %v634
    %1591 = vmatpush1.msra.mxu0 %v633
    %1592 = vmatprep.subr.mxu0 %v630
    %1593 = vmatpush1.msra.mxu0 %v629
    %1594 = vmatprep.subr.mxu0 %v626
    %1595 = vmatpush1.msra.mxu0 %v625
    %1596 = vmatprep.subr.mxu0 %v622
    %1597 = vmatpush1.msra.mxu0 %v621
    %1598 = vmatprep.subr.mxu0 %v618
    %1599 = vmatpush1.msra.mxu0 %v617
    %1600 = vmatprep.subr.mxu0 %v614
    %1601 = vmatpush1.msra.mxu0 %v613
    %1602 = vmatprep.subr.mxu0 %v610
    %1603 = vmatpush1.msra.mxu0 %v609
    %1604 = vmatprep.subr.mxu0 %v606
    %1605 = vmatpush1.msra.mxu0 %v605
    %1606 = vmatprep.subr.mxu0 0.0
    %1607 = vmatpush2.msra.mxu0 0.0
    %1608 = vmatprep.subr.mxu0 0.0
    %1609 = vmatpush2.msra.mxu0 0.0
    %1610 = vmatprep.subr.mxu0 0.0
    %1611 = vmatpush2.msra.mxu0 0.0
    %1612 = vmatprep.subr.mxu0 0.0
    %1613 = vmatpush2.msra.mxu0 0.0
    %1614 = vmatprep.subr.mxu0 0.0
    %1615 = vmatpush2.msra.mxu0 0.0
    %1616 = vmatprep.subr.mxu0 0.0
    %1617 = vmatpush2.msra.mxu0 0.0
    %1618 = vmatprep.subr.mxu0 0.0
    %1619 = vmatpush2.msra.mxu0 0.0
    %1620 = vmatprep.subr.mxu0 0.0
    %1621 = vmatpush2.msra.mxu0 0.0
    %1622 = vmatprep.subr.mxu0 0.0
    %1623 = vmatpush2.msra.mxu0 0.0
    %1624 = vmatprep.subr.mxu0 0.0
    %1625 = vmatpush2.msra.mxu0 0.0
    %1626 = vmatprep.subr.mxu0 0.0
    %1627 = vmatpush2.msra.mxu0 0.0
    %1628 = vmatprep.subr.mxu0 0.0
    %1629 = vmatpush2.msra.mxu0 0.0
    %1630 = vmatprep.subr.mxu0 0.0
    %1631 = vmatpush2.msra.mxu0 0.0
    %1632 = vmatprep.subr.mxu0 0.0
    %1633 = vmatpush2.msra.mxu0 0.0
    %1634 = vmatprep.subr.mxu0 0.0
    %1635 = vmatpush2.msra.mxu0 0.0
    %1636 = vmatprep.subr.mxu0 0.0
    %1637 = vmatpush2.msra.mxu0 0.0
    %1638 = vmatprep.mubr.f32.mxu0 0.0
    %1639 = vmatmul.mubr.f32.gmra.mxu0 %v1572
    %v1640 = vpop.f32.mrf.mxu0
    %v1641 = vadd.f32 0.0, %v1640
    %v1642 = vpop.f32.mrf.mxu0
    %v1643 = vadd.f32 0.0, %v1642
    %1644 = vdwg.mxu0
    %1645 = vmatprep.subr.mxu0 %v668
    %1646 = vmatpush1.msra.mxu0 %v667
    %1647 = vmatprep.subr.mxu0 %v664
    %1648 = vmatpush1.msra.mxu0 %v663
    %1649 = vmatprep.subr.mxu0 %v660
    %1650 = vmatpush1.msra.mxu0 %v659
    %1651 = vmatprep.subr.mxu0 %v656
    %1652 = vmatpush1.msra.mxu0 %v655
    %1653 = vmatprep.subr.mxu0 %v652
    %1654 = vmatpush1.msra.mxu0 %v651
    %1655 = vmatprep.subr.mxu0 %v648
    %1656 = vmatpush1.msra.mxu0 %v647
    %1657 = vmatprep.subr.mxu0 %v644
    %1658 = vmatpush1.msra.mxu0 %v643
    %1659 = vmatprep.subr.mxu0 %v640
    %1660 = vmatpush1.msra.mxu0 %v639
    %1661 = vmatprep.subr.mxu0 %v636
    %1662 = vmatpush1.msra.mxu0 %v635
    %1663 = vmatprep.subr.mxu0 %v632
    %1664 = vmatpush1.msra.mxu0 %v631
    %1665 = vmatprep.subr.mxu0 %v628
    %1666 = vmatpush1.msra.mxu0 %v627
    %1667 = vmatprep.subr.mxu0 %v624
    %1668 = vmatpush1.msra.mxu0 %v623
    %1669 = vmatprep.subr.mxu0 %v620
    %1670 = vmatpush1.msra.mxu0 %v619
    %1671 = vmatprep.subr.mxu0 %v616
    %1672 = vmatpush1.msra.mxu0 %v615
    %1673 = vmatprep.subr.mxu0 %v612
    %1674 = vmatpush1.msra.mxu0 %v611
    %1675 = vmatprep.subr.mxu0 %v608
    %1676 = vmatpush1.msra.mxu0 %v607
    %1677 = vmatprep.subr.mxu0 0.0
    %1678 = vmatpush2.msra.mxu0 0.0
    %1679 = vmatprep.subr.mxu0 0.0
    %1680 = vmatpush2.msra.mxu0 0.0
    %1681 = vmatprep.subr.mxu0 0.0
    %1682 = vmatpush2.msra.mxu0 0.0
    %1683 = vmatprep.subr.mxu0 0.0
    %1684 = vmatpush2.msra.mxu0 0.0
    %1685 = vmatprep.subr.mxu0 0.0
    %1686 = vmatpush2.msra.mxu0 0.0
    %1687 = vmatprep.subr.mxu0 0.0
    %1688 = vmatpush2.msra.mxu0 0.0
    %1689 = vmatprep.subr.mxu0 0.0
    %1690 = vmatpush2.msra.mxu0 0.0
    %1691 = vmatprep.subr.mxu0 0.0
    %1692 = vmatpush2.msra.mxu0 0.0
    %1693 = vmatprep.subr.mxu0 0.0
    %1694 = vmatpush2.msra.mxu0 0.0
    %1695 = vmatprep.subr.mxu0 0.0
    %1696 = vmatpush2.msra.mxu0 0.0
    %1697 = vmatprep.subr.mxu0 0.0
    %1698 = vmatpush2.msra.mxu0 0.0
    %1699 = vmatprep.subr.mxu0 0.0
    %1700 = vmatpush2.msra.mxu0 0.0
    %1701 = vmatprep.subr.mxu0 0.0
    %1702 = vmatpush2.msra.mxu0 0.0
    %1703 = vmatprep.subr.mxu0 0.0
    %1704 = vmatpush2.msra.mxu0 0.0
    %1705 = vmatprep.subr.mxu0 0.0
    %1706 = vmatpush2.msra.mxu0 0.0
    %1707 = vmatprep.subr.mxu0 0.0
    %1708 = vmatpush2.msra.mxu0 0.0
    %1709 = vmatprep.mubr.f32.mxu0 0.0
    %1710 = vmatmul.mubr.f32.gmra.mxu0 %v1572
    %v1711 = vpop.f32.mrf.mxu0
    %v1712 = vadd.f32 0.0, %v1711
    %v1713 = vpop.f32.mrf.mxu0
    %v1714 = vadd.f32 0.0, %v1713
    %1715 = vdwg.mxu0
    %v1720 = vrot.slane %v1641, 4
    %v1721 = vrot.slane %v1643, 4
    %v1722 = vrot.slane %v1712, 4
    %v1723 = vrot.slane %v1714, 4
    %v1724 = vrot.slane %v1641, 5
    %v1725 = vrot.slane %v1643, 5
    %v1726 = vrot.slane %v1712, 5
    %v1727 = vrot.slane %v1714, 5
    %v1736 = vadd.f32 %v518, %v1720
    %v1737 = vadd.f32 %v520, %v1721
    %v1738 = vadd.f32 %v595, %v1722
    %v1739 = vadd.f32 %v597, %v1723
    %v1740 = vadd.f32 %v524, %v1724
    %v1741 = vadd.f32 %v526, %v1725
    %v1742 = vadd.f32 %v601, %v1726
    %v1743 = vadd.f32 %v603, %v1727
    %v1744 = vxor.u32 %v1736, 2147483648
    %v1745 = vxor.u32 %v1740, 2147483648
    %v1746 = vmul.f32 %v1744, 1.442695
    %v1747 = vpow.pop %v1746
    %v1748 = vmul.f32 %v1745, 1.442695
    %v1749 = vpow.pop %v1748
    %v1750 = vadd.f32 %v1747, 1.0
    %v1751 = vadd.f32 %v1749, 1.0
    %v1752 = vrcp.pop %v1750
    %v1753 = vmul.f32 1.0, %v1752
    %v1754 = vrcp.pop %v1751
    %v1755 = vmul.f32 1.0, %v1754
    %v1756 = vxor.u32 %v1737, 2147483648
    %v1757 = vxor.u32 %v1741, 2147483648
    %v1758 = vmul.f32 %v1756, 1.442695
    %v1759 = vpow.pop %v1758
    %v1760 = vmul.f32 %v1757, 1.442695
    %v1761 = vpow.pop %v1760
    %v1762 = vadd.f32 %v1759, 1.0
    %v1763 = vadd.f32 %v1761, 1.0
    %v1764 = vrcp.pop %v1762
    %v1765 = vmul.f32 1.0, %v1764
    %v1766 = vrcp.pop %v1763
    %v1767 = vmul.f32 1.0, %v1766
    %v1768 = vtanh.pop %v1738
    %v1769 = vtanh.pop %v1742
    %v1770 = vxor.u32 %v1739, 2147483648
    %v1771 = vxor.u32 %v1743, 2147483648
    %v1772 = vmul.f32 %v1770, 1.442695
    %v1773 = vpow.pop %v1772
    %v1774 = vmul.f32 %v1771, 1.442695
    %v1775 = vpow.pop %v1774
    %v1776 = vadd.f32 %v1773, 1.0
    %v1777 = vadd.f32 %v1775, 1.0
    %v1778 = vrcp.pop %v1776
    %v1779 = vmul.f32 1.0, %v1778
    %v1780 = vrcp.pop %v1777
    %v1781 = vmul.f32 1.0, %v1780
    %v1784 = vrot.slane %v1562, 7
    %v1785 = vrot.slane %v1563, 7
    %v1788 = vmul.f32 %v1765, %v1784
    %v1789 = vmul.f32 %v1767, %v1785
    %v1790 = vmul.f32 %v1753, %v1768
    %v1791 = vmul.f32 %v1755, %v1769
    %v1792 = vadd.f32 %v1788, %v1790
    %v1793 = vadd.f32 %v1789, %v1791
    %v1794 = vtanh.pop %v1792
    %v1795 = vtanh.pop %v1793
    %v1796 = vmul.f32 %v1779, %v1794
    %v1797 = vmul.f32 %v1781, %v1795
    %v1800 = vrot.slane %v1796, 4
    %v1801 = vrot.slane %v1797, 3
    %v1802 = vsel %vm886, %v1801, %v1800
    %1804 = vmatprep.subr.mxu0 %v666
    %1805 = vmatpush1.msra.mxu0 %v665
    %1806 = vmatprep.subr.mxu0 %v662
    %1807 = vmatpush1.msra.mxu0 %v661
    %1808 = vmatprep.subr.mxu0 %v658
    %1809 = vmatpush1.msra.mxu0 %v657
    %1810 = vmatprep.subr.mxu0 %v654
    %1811 = vmatpush1.msra.mxu0 %v653
    %1812 = vmatprep.subr.mxu0 %v650
    %1813 = vmatpush1.msra.mxu0 %v649
    %1814 = vmatprep.subr.mxu0 %v646
    %1815 = vmatpush1.msra.mxu0 %v645
    %1816 = vmatprep.subr.mxu0 %v642
    %1817 = vmatpush1.msra.mxu0 %v641
    %1818 = vmatprep.subr.mxu0 %v638
    %1819 = vmatpush1.msra.mxu0 %v637
    %1820 = vmatprep.subr.mxu0 %v634
    %1821 = vmatpush1.msra.mxu0 %v633
    %1822 = vmatprep.subr.mxu0 %v630
    %1823 = vmatpush1.msra.mxu0 %v629
    %1824 = vmatprep.subr.mxu0 %v626
    %1825 = vmatpush1.msra.mxu0 %v625
    %1826 = vmatprep.subr.mxu0 %v622
    %1827 = vmatpush1.msra.mxu0 %v621
    %1828 = vmatprep.subr.mxu0 %v618
    %1829 = vmatpush1.msra.mxu0 %v617
    %1830 = vmatprep.subr.mxu0 %v614
    %1831 = vmatpush1.msra.mxu0 %v613
    %1832 = vmatprep.subr.mxu0 %v610
    %1833 = vmatpush1.msra.mxu0 %v609
    %1834 = vmatprep.subr.mxu0 %v606
    %1835 = vmatpush1.msra.mxu0 %v605
    %1836 = vmatprep.subr.mxu0 0.0
    %1837 = vmatpush2.msra.mxu0 0.0
    %1838 = vmatprep.subr.mxu0 0.0
    %1839 = vmatpush2.msra.mxu0 0.0
    %1840 = vmatprep.subr.mxu0 0.0
    %1841 = vmatpush2.msra.mxu0 0.0
    %1842 = vmatprep.subr.mxu0 0.0
    %1843 = vmatpush2.msra.mxu0 0.0
    %1844 = vmatprep.subr.mxu0 0.0
    %1845 = vmatpush2.msra.mxu0 0.0
    %1846 = vmatprep.subr.mxu0 0.0
    %1847 = vmatpush2.msra.mxu0 0.0
    %1848 = vmatprep.subr.mxu0 0.0
    %1849 = vmatpush2.msra.mxu0 0.0
    %1850 = vmatprep.subr.mxu0 0.0
    %1851 = vmatpush2.msra.mxu0 0.0
    %1852 = vmatprep.subr.mxu0 0.0
    %1853 = vmatpush2.msra.mxu0 0.0
    %1854 = vmatprep.subr.mxu0 0.0
    %1855 = vmatpush2.msra.mxu0 0.0
    %1856 = vmatprep.subr.mxu0 0.0
    %1857 = vmatpush2.msra.mxu0 0.0
    %1858 = vmatprep.subr.mxu0 0.0
    %1859 = vmatpush2.msra.mxu0 0.0
    %1860 = vmatprep.subr.mxu0 0.0
    %1861 = vmatpush2.msra.mxu0 0.0
    %1862 = vmatprep.subr.mxu0 0.0
    %1863 = vmatpush2.msra.mxu0 0.0
    %1864 = vmatprep.subr.mxu0 0.0
    %1865 = vmatpush2.msra.mxu0 0.0
    %1866 = vmatprep.subr.mxu0 0.0
    %1867 = vmatpush2.msra.mxu0 0.0
    %1868 = vmatprep.mubr.f32.mxu0 0.0
    %1869 = vmatmul.mubr.f32.gmra.mxu0 %v1802
    %v1870 = vpop.f32.mrf.mxu0
    %v1871 = vadd.f32 0.0, %v1870
    %v1872 = vpop.f32.mrf.mxu0
    %v1873 = vadd.f32 0.0, %v1872
    %1874 = vdwg.mxu0
    %1875 = vmatprep.subr.mxu0 %v668
    %1876 = vmatpush1.msra.mxu0 %v667
    %1877 = vmatprep.subr.mxu0 %v664
    %1878 = vmatpush1.msra.mxu0 %v663
    %1879 = vmatprep.subr.mxu0 %v660
    %1880 = vmatpush1.msra.mxu0 %v659
    %1881 = vmatprep.subr.mxu0 %v656
    %1882 = vmatpush1.msra.mxu0 %v655
    %1883 = vmatprep.subr.mxu0 %v652
    %1884 = vmatpush1.msra.mxu0 %v651
    %1885 = vmatprep.subr.mxu0 %v648
    %1886 = vmatpush1.msra.mxu0 %v647
    %1887 = vmatprep.subr.mxu0 %v644
    %1888 = vmatpush1.msra.mxu0 %v643
    %1889 = vmatprep.subr.mxu0 %v640
    %1890 = vmatpush1.msra.mxu0 %v639
    %1891 = vmatprep.subr.mxu0 %v636
    %1892 = vmatpush1.msra.mxu0 %v635
    %1893 = vmatprep.subr.mxu0 %v632
    %1894 = vmatpush1.msra.mxu0 %v631
    %1895 = vmatprep.subr.mxu0 %v628
    %1896 = vmatpush1.msra.mxu0 %v627
    %1897 = vmatprep.subr.mxu0 %v624
    %1898 = vmatpush1.msra.mxu0 %v623
    %1899 = vmatprep.subr.mxu0 %v620
    %1900 = vmatpush1.msra.mxu0 %v619
    %1901 = vmatprep.subr.mxu0 %v616
    %1902 = vmatpush1.msra.mxu0 %v615
    %1903 = vmatprep.subr.mxu0 %v612
    %1904 = vmatpush1.msra.mxu0 %v611
    %1905 = vmatprep.subr.mxu0 %v608
    %1906 = vmatpush1.msra.mxu0 %v607
    %1907 = vmatprep.subr.mxu0 0.0
    %1908 = vmatpush2.msra.mxu0 0.0
    %1909 = vmatprep.subr.mxu0 0.0
    %1910 = vmatpush2.msra.mxu0 0.0
    %1911 = vmatprep.subr.mxu0 0.0
    %1912 = vmatpush2.msra.mxu0 0.0
    %1913 = vmatprep.subr.mxu0 0.0
    %1914 = vmatpush2.msra.mxu0 0.0
    %1915 = vmatprep.subr.mxu0 0.0
    %1916 = vmatpush2.msra.mxu0 0.0
    %1917 = vmatprep.subr.mxu0 0.0
    %1918 = vmatpush2.msra.mxu0 0.0
    %1919 = vmatprep.subr.mxu0 0.0
    %1920 = vmatpush2.msra.mxu0 0.0
    %1921 = vmatprep.subr.mxu0 0.0
    %1922 = vmatpush2.msra.mxu0 0.0
    %1923 = vmatprep.subr.mxu0 0.0
    %1924 = vmatpush2.msra.mxu0 0.0
    %1925 = vmatprep.subr.mxu0 0.0
    %1926 = vmatpush2.msra.mxu0 0.0
    %1927 = vmatprep.subr.mxu0 0.0
    %1928 = vmatpush2.msra.mxu0 0.0
    %1929 = vmatprep.subr.mxu0 0.0
    %1930 = vmatpush2.msra.mxu0 0.0
    %1931 = vmatprep.subr.mxu0 0.0
    %1932 = vmatpush2.msra.mxu0 0.0
    %1933 = vmatprep.subr.mxu0 0.0
    %1934 = vmatpush2.msra.mxu0 0.0
    %1935 = vmatprep.subr.mxu0 0.0
    %1936 = vmatpush2.msra.mxu0 0.0
    %1937 = vmatprep.subr.mxu0 0.0
    %1938 = vmatpush2.msra.mxu0 0.0
    %1939 = vmatprep.mubr.f32.mxu0 0.0
    %1940 = vmatmul.mubr.f32.gmra.mxu0 %v1802
    %v1941 = vpop.f32.mrf.mxu0
    %v1942 = vadd.f32 0.0, %v1941
    %v1943 = vpop.f32.mrf.mxu0
    %v1944 = vadd.f32 0.0, %v1943
    %1945 = vdwg.mxu0
    %v1950 = vrot.slane %v1871, 3
    %v1951 = vrot.slane %v1873, 3
    %v1952 = vrot.slane %v1942, 3
    %v1953 = vrot.slane %v1944, 3
    %v1954 = vrot.slane %v1871, 4
    %v1955 = vrot.slane %v1873, 4
    %v1956 = vrot.slane %v1942, 4
    %v1957 = vrot.slane %v1944, 4
    %v1966 = vadd.f32 %v518, %v1950
    %v1967 = vadd.f32 %v520, %v1951
    %v1968 = vadd.f32 %v595, %v1952
    %v1969 = vadd.f32 %v597, %v1953
    %v1970 = vadd.f32 %v524, %v1954
    %v1971 = vadd.f32 %v526, %v1955
    %v1972 = vadd.f32 %v601, %v1956
    %v1973 = vadd.f32 %v603, %v1957
    %v1974 = vxor.u32 %v1966, 2147483648
    %v1975 = vxor.u32 %v1970, 2147483648
    %v1976 = vmul.f32 %v1974, 1.442695
    %v1977 = vpow.pop %v1976
    %v1978 = vmul.f32 %v1975, 1.442695
    %v1979 = vpow.pop %v1978
    %v1980 = vadd.f32 %v1977, 1.0
    %v1981 = vadd.f32 %v1979, 1.0
    %v1982 = vrcp.pop %v1980
    %v1983 = vmul.f32 1.0, %v1982
    %v1984 = vrcp.pop %v1981
    %v1985 = vmul.f32 1.0, %v1984
    %v1986 = vxor.u32 %v1967, 2147483648
    %v1987 = vxor.u32 %v1971, 2147483648
    %v1988 = vmul.f32 %v1986, 1.442695
    %v1989 = vpow.pop %v1988
    %v1990 = vmul.f32 %v1987, 1.442695
    %v1991 = vpow.pop %v1990
    %v1992 = vadd.f32 %v1989, 1.0
    %v1993 = vadd.f32 %v1991, 1.0
    %v1994 = vrcp.pop %v1992
    %v1995 = vmul.f32 1.0, %v1994
    %v1996 = vrcp.pop %v1993
    %v1997 = vmul.f32 1.0, %v1996
    %v1998 = vtanh.pop %v1968
    %v1999 = vtanh.pop %v1972
    %v2000 = vxor.u32 %v1969, 2147483648
    %v2001 = vxor.u32 %v1973, 2147483648
    %v2002 = vmul.f32 %v2000, 1.442695
    %v2003 = vpow.pop %v2002
    %v2004 = vmul.f32 %v2001, 1.442695
    %v2005 = vpow.pop %v2004
    %v2006 = vadd.f32 %v2003, 1.0
    %v2007 = vadd.f32 %v2005, 1.0
    %v2008 = vrcp.pop %v2006
    %v2009 = vmul.f32 1.0, %v2008
    %v2010 = vrcp.pop %v2007
    %v2011 = vmul.f32 1.0, %v2010
    %v2014 = vrot.slane %v1792, 7
    %v2015 = vrot.slane %v1793, 7
    %v2018 = vmul.f32 %v1995, %v2014
    %v2019 = vmul.f32 %v1997, %v2015
    %v2020 = vmul.f32 %v1983, %v1998
    %v2021 = vmul.f32 %v1985, %v1999
    %v2022 = vadd.f32 %v2018, %v2020
    %v2023 = vadd.f32 %v2019, %v2021
    %v2024 = vtanh.pop %v2022
    %v2025 = vtanh.pop %v2023
    %v2026 = vmul.f32 %v2009, %v2024
    %v2027 = vmul.f32 %v2011, %v2025
    %v2030 = vrot.slane %v2026, 5
    %v2031 = vrot.slane %v2027, 4
    %v2032 = vsel %vm886, %v2031, %v2030
    %2034 = vmatprep.subr.mxu0 %v666
    %2035 = vmatpush1.msra.mxu0 %v665
    %2036 = vmatprep.subr.mxu0 %v662
    %2037 = vmatpush1.msra.mxu0 %v661
    %2038 = vmatprep.subr.mxu0 %v658
    %2039 = vmatpush1.msra.mxu0 %v657
    %2040 = vmatprep.subr.mxu0 %v654
    %2041 = vmatpush1.msra.mxu0 %v653
    %2042 = vmatprep.subr.mxu0 %v650
    %2043 = vmatpush1.msra.mxu0 %v649
    %2044 = vmatprep.subr.mxu0 %v646
    %2045 = vmatpush1.msra.mxu0 %v645
    %2046 = vmatprep.subr.mxu0 %v642
    %2047 = vmatpush1.msra.mxu0 %v641
    %2048 = vmatprep.subr.mxu0 %v638
    %2049 = vmatpush1.msra.mxu0 %v637
    %2050 = vmatprep.subr.mxu0 %v634
    %2051 = vmatpush1.msra.mxu0 %v633
    %2052 = vmatprep.subr.mxu0 %v630
    %2053 = vmatpush1.msra.mxu0 %v629
    %2054 = vmatprep.subr.mxu0 %v626
    %2055 = vmatpush1.msra.mxu0 %v625
    %2056 = vmatprep.subr.mxu0 %v622
    %2057 = vmatpush1.msra.mxu0 %v621
    %2058 = vmatprep.subr.mxu0 %v618
    %2059 = vmatpush1.msra.mxu0 %v617
    %2060 = vmatprep.subr.mxu0 %v614
    %2061 = vmatpush1.msra.mxu0 %v613
    %2062 = vmatprep.subr.mxu0 %v610
    %2063 = vmatpush1.msra.mxu0 %v609
    %2064 = vmatprep.subr.mxu0 %v606
    %2065 = vmatpush1.msra.mxu0 %v605
    %2066 = vmatprep.subr.mxu0 0.0
    %2067 = vmatpush2.msra.mxu0 0.0
    %2068 = vmatprep.subr.mxu0 0.0
    %2069 = vmatpush2.msra.mxu0 0.0
    %2070 = vmatprep.subr.mxu0 0.0
    %2071 = vmatpush2.msra.mxu0 0.0
    %2072 = vmatprep.subr.mxu0 0.0
    %2073 = vmatpush2.msra.mxu0 0.0
    %2074 = vmatprep.subr.mxu0 0.0
    %2075 = vmatpush2.msra.mxu0 0.0
    %2076 = vmatprep.subr.mxu0 0.0
    %2077 = vmatpush2.msra.mxu0 0.0
    %2078 = vmatprep.subr.mxu0 0.0
    %2079 = vmatpush2.msra.mxu0 0.0
    %2080 = vmatprep.subr.mxu0 0.0
    %2081 = vmatpush2.msra.mxu0 0.0
    %2082 = vmatprep.subr.mxu0 0.0
    %2083 = vmatpush2.msra.mxu0 0.0
    %2084 = vmatprep.subr.mxu0 0.0
    %2085 = vmatpush2.msra.mxu0 0.0
    %2086 = vmatprep.subr.mxu0 0.0
    %2087 = vmatpush2.msra.mxu0 0.0
    %2088 = vmatprep.subr.mxu0 0.0
    %2089 = vmatpush2.msra.mxu0 0.0
    %2090 = vmatprep.subr.mxu0 0.0
    %2091 = vmatpush2.msra.mxu0 0.0
    %2092 = vmatprep.subr.mxu0 0.0
    %2093 = vmatpush2.msra.mxu0 0.0
    %2094 = vmatprep.subr.mxu0 0.0
    %2095 = vmatpush2.msra.mxu0 0.0
    %2096 = vmatprep.subr.mxu0 0.0
    %2097 = vmatpush2.msra.mxu0 0.0
    %2098 = vmatprep.mubr.f32.mxu0 0.0
    %2099 = vmatmul.mubr.f32.gmra.mxu0 %v2032
    %v2100 = vpop.f32.mrf.mxu0
    %v2101 = vadd.f32 0.0, %v2100
    %v2102 = vpop.f32.mrf.mxu0
    %v2103 = vadd.f32 0.0, %v2102
    %2104 = vdwg.mxu0
    %2105 = vmatprep.subr.mxu0 %v668
    %2106 = vmatpush1.msra.mxu0 %v667
    %2107 = vmatprep.subr.mxu0 %v664
    %2108 = vmatpush1.msra.mxu0 %v663
    %2109 = vmatprep.subr.mxu0 %v660
    %2110 = vmatpush1.msra.mxu0 %v659
    %2111 = vmatprep.subr.mxu0 %v656
    %2112 = vmatpush1.msra.mxu0 %v655
    %2113 = vmatprep.subr.mxu0 %v652
    %2114 = vmatpush1.msra.mxu0 %v651
    %2115 = vmatprep.subr.mxu0 %v648
    %2116 = vmatpush1.msra.mxu0 %v647
    %2117 = vmatprep.subr.mxu0 %v644
    %2118 = vmatpush1.msra.mxu0 %v643
    %2119 = vmatprep.subr.mxu0 %v640
    %2120 = vmatpush1.msra.mxu0 %v639
    %2121 = vmatprep.subr.mxu0 %v636
    %2122 = vmatpush1.msra.mxu0 %v635
    %2123 = vmatprep.subr.mxu0 %v632
    %2124 = vmatpush1.msra.mxu0 %v631
    %2125 = vmatprep.subr.mxu0 %v628
    %2126 = vmatpush1.msra.mxu0 %v627
    %2127 = vmatprep.subr.mxu0 %v624
    %2128 = vmatpush1.msra.mxu0 %v623
    %2129 = vmatprep.subr.mxu0 %v620
    %2130 = vmatpush1.msra.mxu0 %v619
    %2131 = vmatprep.subr.mxu0 %v616
    %2132 = vmatpush1.msra.mxu0 %v615
    %2133 = vmatprep.subr.mxu0 %v612
    %2134 = vmatpush1.msra.mxu0 %v611
    %2135 = vmatprep.subr.mxu0 %v608
    %2136 = vmatpush1.msra.mxu0 %v607
    %2137 = vmatprep.subr.mxu0 0.0
    %2138 = vmatpush2.msra.mxu0 0.0
    %2139 = vmatprep.subr.mxu0 0.0
    %2140 = vmatpush2.msra.mxu0 0.0
    %2141 = vmatprep.subr.mxu0 0.0
    %2142 = vmatpush2.msra.mxu0 0.0
    %2143 = vmatprep.subr.mxu0 0.0
    %2144 = vmatpush2.msra.mxu0 0.0
    %2145 = vmatprep.subr.mxu0 0.0
    %2146 = vmatpush2.msra.mxu0 0.0
    %2147 = vmatprep.subr.mxu0 0.0
    %2148 = vmatpush2.msra.mxu0 0.0
    %2149 = vmatprep.subr.mxu0 0.0
    %2150 = vmatpush2.msra.mxu0 0.0
    %2151 = vmatprep.subr.mxu0 0.0
    %2152 = vmatpush2.msra.mxu0 0.0
    %2153 = vmatprep.subr.mxu0 0.0
    %2154 = vmatpush2.msra.mxu0 0.0
    %2155 = vmatprep.subr.mxu0 0.0
    %2156 = vmatpush2.msra.mxu0 0.0
    %2157 = vmatprep.subr.mxu0 0.0
    %2158 = vmatpush2.msra.mxu0 0.0
    %2159 = vmatprep.subr.mxu0 0.0
    %2160 = vmatpush2.msra.mxu0 0.0
    %2161 = vmatprep.subr.mxu0 0.0
    %2162 = vmatpush2.msra.mxu0 0.0
    %2163 = vmatprep.subr.mxu0 0.0
    %2164 = vmatpush2.msra.mxu0 0.0
    %2165 = vmatprep.subr.mxu0 0.0
    %2166 = vmatpush2.msra.mxu0 0.0
    %2167 = vmatprep.subr.mxu0 0.0
    %2168 = vmatpush2.msra.mxu0 0.0
    %2169 = vmatprep.mubr.f32.mxu0 0.0
    %2170 = vmatmul.mubr.f32.gmra.mxu0 %v2032
    %v2171 = vpop.f32.mrf.mxu0
    %v2172 = vadd.f32 0.0, %v2171
    %v2173 = vpop.f32.mrf.mxu0
    %v2174 = vadd.f32 0.0, %v2173
    %2175 = vdwg.mxu0
    %v2180 = vrot.slane %v2101, 2
    %v2181 = vrot.slane %v2103, 2
    %v2182 = vrot.slane %v2172, 2
    %v2183 = vrot.slane %v2174, 2
    %v2184 = vrot.slane %v2101, 3
    %v2185 = vrot.slane %v2103, 3
    %v2186 = vrot.slane %v2172, 3
    %v2187 = vrot.slane %v2174, 3
    %v2196 = vadd.f32 %v518, %v2180
    %v2197 = vadd.f32 %v520, %v2181
    %v2198 = vadd.f32 %v595, %v2182
    %v2199 = vadd.f32 %v597, %v2183
    %v2200 = vadd.f32 %v524, %v2184
    %v2201 = vadd.f32 %v526, %v2185
    %v2202 = vadd.f32 %v601, %v2186
    %v2203 = vadd.f32 %v603, %v2187
    %v2204 = vxor.u32 %v2196, 2147483648
    %v2205 = vxor.u32 %v2200, 2147483648
    %v2206 = vmul.f32 %v2204, 1.442695
    %v2207 = vpow.pop %v2206
    %v2208 = vmul.f32 %v2205, 1.442695
    %v2209 = vpow.pop %v2208
    %v2210 = vadd.f32 %v2207, 1.0
    %v2211 = vadd.f32 %v2209, 1.0
    %v2212 = vrcp.pop %v2210
    %v2213 = vmul.f32 1.0, %v2212
    %v2214 = vrcp.pop %v2211
    %v2215 = vmul.f32 1.0, %v2214
    %v2216 = vxor.u32 %v2197, 2147483648
    %v2217 = vxor.u32 %v2201, 2147483648
    %v2218 = vmul.f32 %v2216, 1.442695
    %v2219 = vpow.pop %v2218
    %v2220 = vmul.f32 %v2217, 1.442695
    %v2221 = vpow.pop %v2220
    %v2222 = vadd.f32 %v2219, 1.0
    %v2223 = vadd.f32 %v2221, 1.0
    %v2224 = vrcp.pop %v2222
    %v2225 = vmul.f32 1.0, %v2224
    %v2226 = vrcp.pop %v2223
    %v2227 = vmul.f32 1.0, %v2226
    %v2228 = vtanh.pop %v2198
    %v2229 = vtanh.pop %v2202
    %v2230 = vxor.u32 %v2199, 2147483648
    %v2231 = vxor.u32 %v2203, 2147483648
    %v2232 = vmul.f32 %v2230, 1.442695
    %v2233 = vpow.pop %v2232
    %v2234 = vmul.f32 %v2231, 1.442695
    %v2235 = vpow.pop %v2234
    %v2236 = vadd.f32 %v2233, 1.0
    %v2237 = vadd.f32 %v2235, 1.0
    %v2238 = vrcp.pop %v2236
    %v2239 = vmul.f32 1.0, %v2238
    %v2240 = vrcp.pop %v2237
    %v2241 = vmul.f32 1.0, %v2240
    %v2244 = vrot.slane %v2022, 7
    %v2245 = vrot.slane %v2023, 7
    %v2248 = vmul.f32 %v2225, %v2244
    %v2249 = vmul.f32 %v2227, %v2245
    %v2250 = vmul.f32 %v2213, %v2228
    %v2251 = vmul.f32 %v2215, %v2229
    %v2252 = vadd.f32 %v2248, %v2250
    %v2253 = vadd.f32 %v2249, %v2251
    %v2254 = vtanh.pop %v2252
    %v2255 = vtanh.pop %v2253
    %v2256 = vmul.f32 %v2239, %v2254
    %v2257 = vmul.f32 %v2241, %v2255
    %v2260 = vrot.slane %v2256, 6
    %v2261 = vrot.slane %v2257, 5
    %v2262 = vsel %vm886, %v2261, %v2260
    %2264 = vmatprep.subr.mxu0 %v666
    %2265 = vmatpush1.msra.mxu0 %v665
    %2266 = vmatprep.subr.mxu0 %v662
    %2267 = vmatpush1.msra.mxu0 %v661
    %2268 = vmatprep.subr.mxu0 %v658
    %2269 = vmatpush1.msra.mxu0 %v657
    %2270 = vmatprep.subr.mxu0 %v654
    %2271 = vmatpush1.msra.mxu0 %v653
    %2272 = vmatprep.subr.mxu0 %v650
    %2273 = vmatpush1.msra.mxu0 %v649
    %2274 = vmatprep.subr.mxu0 %v646
    %2275 = vmatpush1.msra.mxu0 %v645
    %2276 = vmatprep.subr.mxu0 %v642
    %2277 = vmatpush1.msra.mxu0 %v641
    %2278 = vmatprep.subr.mxu0 %v638
    %2279 = vmatpush1.msra.mxu0 %v637
    %2280 = vmatprep.subr.mxu0 %v634
    %2281 = vmatpush1.msra.mxu0 %v633
    %2282 = vmatprep.subr.mxu0 %v630
    %2283 = vmatpush1.msra.mxu0 %v629
    %2284 = vmatprep.subr.mxu0 %v626
    %2285 = vmatpush1.msra.mxu0 %v625
    %2286 = vmatprep.subr.mxu0 %v622
    %2287 = vmatpush1.msra.mxu0 %v621
    %2288 = vmatprep.subr.mxu0 %v618
    %2289 = vmatpush1.msra.mxu0 %v617
    %2290 = vmatprep.subr.mxu0 %v614
    %2291 = vmatpush1.msra.mxu0 %v613
    %2292 = vmatprep.subr.mxu0 %v610
    %2293 = vmatpush1.msra.mxu0 %v609
    %2294 = vmatprep.subr.mxu0 %v606
    %2295 = vmatpush1.msra.mxu0 %v605
    %2296 = vmatprep.subr.mxu0 0.0
    %2297 = vmatpush2.msra.mxu0 0.0
    %2298 = vmatprep.subr.mxu0 0.0
    %2299 = vmatpush2.msra.mxu0 0.0
    %2300 = vmatprep.subr.mxu0 0.0
    %2301 = vmatpush2.msra.mxu0 0.0
    %2302 = vmatprep.subr.mxu0 0.0
    %2303 = vmatpush2.msra.mxu0 0.0
    %2304 = vmatprep.subr.mxu0 0.0
    %2305 = vmatpush2.msra.mxu0 0.0
    %2306 = vmatprep.subr.mxu0 0.0
    %2307 = vmatpush2.msra.mxu0 0.0
    %2308 = vmatprep.subr.mxu0 0.0
    %2309 = vmatpush2.msra.mxu0 0.0
    %2310 = vmatprep.subr.mxu0 0.0
    %2311 = vmatpush2.msra.mxu0 0.0
    %2312 = vmatprep.subr.mxu0 0.0
    %2313 = vmatpush2.msra.mxu0 0.0
    %2314 = vmatprep.subr.mxu0 0.0
    %2315 = vmatpush2.msra.mxu0 0.0
    %2316 = vmatprep.subr.mxu0 0.0
    %2317 = vmatpush2.msra.mxu0 0.0
    %2318 = vmatprep.subr.mxu0 0.0
    %2319 = vmatpush2.msra.mxu0 0.0
    %2320 = vmatprep.subr.mxu0 0.0
    %2321 = vmatpush2.msra.mxu0 0.0
    %2322 = vmatprep.subr.mxu0 0.0
    %2323 = vmatpush2.msra.mxu0 0.0
    %2324 = vmatprep.subr.mxu0 0.0
    %2325 = vmatpush2.msra.mxu0 0.0
    %2326 = vmatprep.subr.mxu0 0.0
    %2327 = vmatpush2.msra.mxu0 0.0
    %2328 = vmatprep.mubr.f32.mxu0 0.0
    %2329 = vmatmul.mubr.f32.gmra.mxu0 %v2262
    %v2330 = vpop.f32.mrf.mxu0
    %v2331 = vadd.f32 0.0, %v2330
    %v2332 = vpop.f32.mrf.mxu0
    %v2333 = vadd.f32 0.0, %v2332
    %2334 = vdwg.mxu0
    %2335 = vmatprep.subr.mxu0 %v668
    %2336 = vmatpush1.msra.mxu0 %v667
    %2337 = vmatprep.subr.mxu0 %v664
    %2338 = vmatpush1.msra.mxu0 %v663
    %2339 = vmatprep.subr.mxu0 %v660
    %2340 = vmatpush1.msra.mxu0 %v659
    %2341 = vmatprep.subr.mxu0 %v656
    %2342 = vmatpush1.msra.mxu0 %v655
    %2343 = vmatprep.subr.mxu0 %v652
    %2344 = vmatpush1.msra.mxu0 %v651
    %2345 = vmatprep.subr.mxu0 %v648
    %2346 = vmatpush1.msra.mxu0 %v647
    %2347 = vmatprep.subr.mxu0 %v644
    %2348 = vmatpush1.msra.mxu0 %v643
    %2349 = vmatprep.subr.mxu0 %v640
    %2350 = vmatpush1.msra.mxu0 %v639
    %2351 = vmatprep.subr.mxu0 %v636
    %2352 = vmatpush1.msra.mxu0 %v635
    %2353 = vmatprep.subr.mxu0 %v632
    %2354 = vmatpush1.msra.mxu0 %v631
    %2355 = vmatprep.subr.mxu0 %v628
    %2356 = vmatpush1.msra.mxu0 %v627
    %2357 = vmatprep.subr.mxu0 %v624
    %2358 = vmatpush1.msra.mxu0 %v623
    %2359 = vmatprep.subr.mxu0 %v620
    %2360 = vmatpush1.msra.mxu0 %v619
    %2361 = vmatprep.subr.mxu0 %v616
    %2362 = vmatpush1.msra.mxu0 %v615
    %2363 = vmatprep.subr.mxu0 %v612
    %2364 = vmatpush1.msra.mxu0 %v611
    %2365 = vmatprep.subr.mxu0 %v608
    %2366 = vmatpush1.msra.mxu0 %v607
    %2367 = vmatprep.subr.mxu0 0.0
    %2368 = vmatpush2.msra.mxu0 0.0
    %2369 = vmatprep.subr.mxu0 0.0
    %2370 = vmatpush2.msra.mxu0 0.0
    %2371 = vmatprep.subr.mxu0 0.0
    %2372 = vmatpush2.msra.mxu0 0.0
    %2373 = vmatprep.subr.mxu0 0.0
    %2374 = vmatpush2.msra.mxu0 0.0
    %2375 = vmatprep.subr.mxu0 0.0
    %2376 = vmatpush2.msra.mxu0 0.0
    %2377 = vmatprep.subr.mxu0 0.0
    %2378 = vmatpush2.msra.mxu0 0.0
    %2379 = vmatprep.subr.mxu0 0.0
    %2380 = vmatpush2.msra.mxu0 0.0
    %2381 = vmatprep.subr.mxu0 0.0
    %2382 = vmatpush2.msra.mxu0 0.0
    %2383 = vmatprep.subr.mxu0 0.0
    %2384 = vmatpush2.msra.mxu0 0.0
    %2385 = vmatprep.subr.mxu0 0.0
    %2386 = vmatpush2.msra.mxu0 0.0
    %2387 = vmatprep.subr.mxu0 0.0
    %2388 = vmatpush2.msra.mxu0 0.0
    %2389 = vmatprep.subr.mxu0 0.0
    %2390 = vmatpush2.msra.mxu0 0.0
    %2391 = vmatprep.subr.mxu0 0.0
    %2392 = vmatpush2.msra.mxu0 0.0
    %2393 = vmatprep.subr.mxu0 0.0
    %2394 = vmatpush2.msra.mxu0 0.0
    %2395 = vmatprep.subr.mxu0 0.0
    %2396 = vmatpush2.msra.mxu0 0.0
    %2397 = vmatprep.subr.mxu0 0.0
    %2398 = vmatpush2.msra.mxu0 0.0
    %2399 = vmatprep.mubr.f32.mxu0 0.0
    %2400 = vmatmul.mubr.f32.gmra.mxu0 %v2262
    %v2401 = vpop.f32.mrf.mxu0
    %v2402 = vadd.f32 0.0, %v2401
    %v2403 = vpop.f32.mrf.mxu0
    %v2404 = vadd.f32 0.0, %v2403
    %2405 = vdwg.mxu0
    %v2410 = vrot.slane %v2331, 1
    %v2411 = vrot.slane %v2333, 1
    %v2412 = vrot.slane %v2402, 1
    %v2413 = vrot.slane %v2404, 1
    %v2414 = vrot.slane %v2331, 2
    %v2415 = vrot.slane %v2333, 2
    %v2416 = vrot.slane %v2402, 2
    %v2417 = vrot.slane %v2404, 2
    %v2426 = vadd.f32 %v518, %v2410
    %v2427 = vadd.f32 %v520, %v2411
    %v2428 = vadd.f32 %v595, %v2412
    %v2429 = vadd.f32 %v597, %v2413
    %v2430 = vadd.f32 %v524, %v2414
    %v2431 = vadd.f32 %v526, %v2415
    %v2432 = vadd.f32 %v601, %v2416
    %v2433 = vadd.f32 %v603, %v2417
    %v2434 = vxor.u32 %v2426, 2147483648
    %v2435 = vxor.u32 %v2430, 2147483648
    %v2436 = vmul.f32 %v2434, 1.442695
    %v2437 = vpow.pop %v2436
    %v2438 = vmul.f32 %v2435, 1.442695
    %v2439 = vpow.pop %v2438
    %v2440 = vadd.f32 %v2437, 1.0
    %v2441 = vadd.f32 %v2439, 1.0
    %v2442 = vrcp.pop %v2440
    %v2443 = vmul.f32 1.0, %v2442
    %v2444 = vrcp.pop %v2441
    %v2445 = vmul.f32 1.0, %v2444
    %v2446 = vxor.u32 %v2427, 2147483648
    %v2447 = vxor.u32 %v2431, 2147483648
    %v2448 = vmul.f32 %v2446, 1.442695
    %v2449 = vpow.pop %v2448
    %v2450 = vmul.f32 %v2447, 1.442695
    %v2451 = vpow.pop %v2450
    %v2452 = vadd.f32 %v2449, 1.0
    %v2453 = vadd.f32 %v2451, 1.0
    %v2454 = vrcp.pop %v2452
    %v2455 = vmul.f32 1.0, %v2454
    %v2456 = vrcp.pop %v2453
    %v2457 = vmul.f32 1.0, %v2456
    %v2458 = vtanh.pop %v2428
    %v2459 = vtanh.pop %v2432
    %v2460 = vxor.u32 %v2429, 2147483648
    %v2461 = vxor.u32 %v2433, 2147483648
    %v2462 = vmul.f32 %v2460, 1.442695
    %v2463 = vpow.pop %v2462
    %v2464 = vmul.f32 %v2461, 1.442695
    %v2465 = vpow.pop %v2464
    %v2466 = vadd.f32 %v2463, 1.0
    %v2467 = vadd.f32 %v2465, 1.0
    %v2468 = vrcp.pop %v2466
    %v2469 = vmul.f32 1.0, %v2468
    %v2470 = vrcp.pop %v2467
    %v2471 = vmul.f32 1.0, %v2470
    %v2474 = vrot.slane %v2252, 7
    %v2475 = vrot.slane %v2253, 7
    %v2478 = vmul.f32 %v2455, %v2474
    %v2479 = vmul.f32 %v2457, %v2475
    %v2480 = vmul.f32 %v2443, %v2458
    %v2481 = vmul.f32 %v2445, %v2459
    %v2482 = vadd.f32 %v2478, %v2480
    %v2483 = vadd.f32 %v2479, %v2481
    %v2484 = vtanh.pop %v2482
    %v2485 = vtanh.pop %v2483
    %v2486 = vmul.f32 %v2469, %v2484
    %v2487 = vmul.f32 %v2471, %v2485
    %v2488 = vld [vmem:[#allocation8] sm:$0xff]
    %v2489 = vld [vmem:[#allocation8 + $0x8] sm:$0xff]
    %v2490 = vld [vmem:[#allocation8 + $0x10] sm:$0xff]
    %v2491 = vld [vmem:[#allocation8 + $0x18] sm:$0xff]
    %v2492 = vld [vmem:[#allocation8 + $0x20] sm:$0xff]
    %v2493 = vld [vmem:[#allocation8 + $0x28] sm:$0xff]
    %v2494 = vld [vmem:[#allocation8 + $0x30] sm:$0xff]
    %v2495 = vld [vmem:[#allocation8 + $0x38] sm:$0xff]
    %v2496 = vld [vmem:[#allocation8 + $0x40] sm:$0xff]
    %v2497 = vld [vmem:[#allocation8 + $0x48] sm:$0xff]
    %v2498 = vld [vmem:[#allocation8 + $0x50] sm:$0xff]
    %v2499 = vld [vmem:[#allocation8 + $0x58] sm:$0xff]
    %v2500 = vld [vmem:[#allocation8 + $0x60] sm:$0xff]
    %v2501 = vld [vmem:[#allocation8 + $0x68] sm:$0xff]
    %v2502 = vld [vmem:[#allocation8 + $0x70] sm:$0xff]
    %v2503 = vld [vmem:[#allocation8 + $0x78] sm:$0xff]
    %v2504 = vld [vmem:[%s6] sm:$0x1]
    %v2506 = vlaneseq
    %v2507 = vshrl.u32 %v2506, 7
    %v2508 = vsub.s32 0, %v2507
    %v2509 = vrot.slane %v2504, %v2508
    %v2513 = vrot.slane %v2486, 7
    %v2514 = vrot.slane %v2487, 6
    %v2515 = vsel %vm886, %v2514, %v2513
    %2517 = vmatprep.subr.mxu0 0.0
    %2518 = vmatpush1.msra.mxu0 %v2503
    %2519 = vmatprep.subr.mxu0 0.0
    %2520 = vmatpush1.msra.mxu0 %v2502
    %2521 = vmatprep.subr.mxu0 0.0
    %2522 = vmatpush1.msra.mxu0 %v2501
    %2523 = vmatprep.subr.mxu0 0.0
    %2524 = vmatpush1.msra.mxu0 %v2500
    %2525 = vmatprep.subr.mxu0 0.0
    %2526 = vmatpush1.msra.mxu0 %v2499
    %2527 = vmatprep.subr.mxu0 0.0
    %2528 = vmatpush1.msra.mxu0 %v2498
    %2529 = vmatprep.subr.mxu0 0.0
    %2530 = vmatpush1.msra.mxu0 %v2497
    %2531 = vmatprep.subr.mxu0 0.0
    %2532 = vmatpush1.msra.mxu0 %v2496
    %2533 = vmatprep.subr.mxu0 0.0
    %2534 = vmatpush1.msra.mxu0 %v2495
    %2535 = vmatprep.subr.mxu0 0.0
    %2536 = vmatpush1.msra.mxu0 %v2494
    %2537 = vmatprep.subr.mxu0 0.0
    %2538 = vmatpush1.msra.mxu0 %v2493
    %2539 = vmatprep.subr.mxu0 0.0
    %2540 = vmatpush1.msra.mxu0 %v2492
    %2541 = vmatprep.subr.mxu0 0.0
    %2542 = vmatpush1.msra.mxu0 %v2491
    %2543 = vmatprep.subr.mxu0 0.0
    %2544 = vmatpush1.msra.mxu0 %v2490
    %2545 = vmatprep.subr.mxu0 0.0
    %2546 = vmatpush1.msra.mxu0 %v2489
    %2547 = vmatprep.subr.mxu0 0.0
    %2548 = vmatpush1.msra.mxu0 %v2488
    %2549 = vmatprep.subr.mxu0 0.0
    %2550 = vmatpush2.msra.mxu0 0.0
    %2551 = vmatprep.subr.mxu0 0.0
    %2552 = vmatpush2.msra.mxu0 0.0
    %2553 = vmatprep.subr.mxu0 0.0
    %2554 = vmatpush2.msra.mxu0 0.0
    %2555 = vmatprep.subr.mxu0 0.0
    %2556 = vmatpush2.msra.mxu0 0.0
    %2557 = vmatprep.subr.mxu0 0.0
    %2558 = vmatpush2.msra.mxu0 0.0
    %2559 = vmatprep.subr.mxu0 0.0
    %2560 = vmatpush2.msra.mxu0 0.0
    %2561 = vmatprep.subr.mxu0 0.0
    %2562 = vmatpush2.msra.mxu0 0.0
    %2563 = vmatprep.subr.mxu0 0.0
    %2564 = vmatpush2.msra.mxu0 0.0
    %2565 = vmatprep.subr.mxu0 0.0
    %2566 = vmatpush2.msra.mxu0 0.0
    %2567 = vmatprep.subr.mxu0 0.0
    %2568 = vmatpush2.msra.mxu0 0.0
    %2569 = vmatprep.subr.mxu0 0.0
    %2570 = vmatpush2.msra.mxu0 0.0
    %2571 = vmatprep.subr.mxu0 0.0
    %2572 = vmatpush2.msra.mxu0 0.0
    %2573 = vmatprep.subr.mxu0 0.0
    %2574 = vmatpush2.msra.mxu0 0.0
    %2575 = vmatprep.subr.mxu0 0.0
    %2576 = vmatpush2.msra.mxu0 0.0
    %2577 = vmatprep.subr.mxu0 0.0
    %2578 = vmatpush2.msra.mxu0 0.0
    %2579 = vmatprep.subr.mxu0 0.0
    %2580 = vmatpush2.msra.mxu0 0.0
    %2581 = vmatprep.mubr.f32.mxu0 0.0
    %2582 = vmatmul.mubr.f32.gmra.mxu0 %v2515
    %v2583 = vpop.f32.mrf.mxu0
    %v2584 = vadd.f32 %v2509, %v2583
    %v2585 = vpop.f32.mrf.mxu0
    %2586 = vdwg.mxu0
    %2587 = vst [vmem:[#allocation10] sm:$0x3] %v2584
    // Predicated region
    $region46: #{model_forward.1} parent=1 // pred_check
      _
    $region47: #{model_forward.1} parent=1 // pred_check_branch
      %2589 = sbr.rel (0) target = $region49
    $region48: #{model_forward.1} parent=1 // pred_region
      %s2591 = ssub.s32 32, 32
      %2592 = vsyncadd [#allocation4], %s2591
      %s2594 = sshll.u32 [#allocation10], 4
      %s2595 = int_to_ptr.vmem [resolvable:$true] %s2594
      %2597 = dma.vmem_to_hbm [thread:$0]  %s2595, 32, %s7, [#allocation4]
    $region49: #{model_forward.1} parent=1 // pred_fallthru
      _
    // Predicated region
    $region50: #{model_forward.1} parent=1 // pred_check
      _
    $region51: #{model_forward.1} parent=1 // pred_check_branch
      %2599 = sbr.rel (0) target = $region53
    $region52: #{model_forward.1} parent=1 // pred_region
      %2600 = dma.done [#allocation4], 32
    $region53: #{model_forward.1} parent=1 // pred_fallthru
      _
    %2601 = vsyncpa [#allocation3], 1
    %2602 = vsyncpa [#allocation6], 1
    %2603 = vsyncpa [#allocation9], 1
    %2604 = vsyncpa [#allocation4], 1

</llo_original>
